<compile_context>
chip_gen: v7x
topology: tpu7x:2x2x1
jax: 0.10.0
libtpu: 0.0.40
codegen_flags: <defaults>
</compile_context>

<pallas_src>
import jax
import jax.numpy as jnp
from jax.experimental import pallas as pl
from jax.experimental.pallas import tpu as pltpu


def _round_up(x, m):
    return (x + m - 1) // m * m


def make_score_kernel(num_layers, lq_pad, lane_dense):
    """num_layers = total Linear layers (>=1); lq_pad = padded query segment length."""

    def kernel(tok_ref, lq_ref, ld_ref, emb_ref, wa_ref, *rest):
        out_ref = rest[-1]
        wrefs = rest[:-1]                      # W0, b0, W1, b1, ...

        tok = tok_ref[...]                     # (TB, Ltot) int32, query||doc tokens
        TB, Ltot = tok.shape
        emb = emb_ref[...]                     # (V, E) bf16
        wa = wa_ref[...]                       # (V, 1) bf16  (EmbeddingWeightedAverage.weights)
        V = emb.shape[0]
        E = emb.shape[1]

        # One VPU pass builds the bf16 one-hot; its only consumers are MXU matmuls.
        oh = (jax.lax.broadcasted_iota(jnp.int32, (TB, Ltot, V), 2)
              == tok[:, :, None]).astype(emb.dtype)                     # (TB, Ltot, V) bf16
        oh2 = oh.reshape(TB * Ltot, V)         # Ltot is a multiple of 8 -> trivial reshape

        # MXU gathers (f32 accumulation): per-token embeddings and per-token pooling logits.
        e_tok = jnp.dot(oh2, emb, preferred_element_type=jnp.float32)   # (TB*Ltot, E)
        w_tok = jnp.dot(oh2, wa, preferred_element_type=jnp.float32)    # (TB*Ltot, 1)
        e_tok = e_tok.reshape(TB, Ltot, E)
        w_tok = w_tok.reshape(TB, Ltot, 1)

        def pool(e_seg, w_seg, lens):
            # Masked softmax over the (sublane) sequence axis; all math stays f32.
            Ls = e_seg.shape[1]
            pos = jax.lax.broadcasted_iota(jnp.int32, (TB, Ls, 1), 1)
            valid = pos < lens[:, :, None]                              # (TB, Ls, 1)
            lg = jnp.where(valid, w_seg, -jnp.inf)
            lg = lg - jnp.max(lg, axis=1, keepdims=True)
            p = jnp.exp(lg)                                             # masked -> 0
            sw = p * pl.reciprocal(jnp.sum(p, axis=1, keepdims=True), approx=True)
            return jnp.sum(sw * e_seg, axis=1)                          # (TB, E) f32

        pooled_q = pool(e_tok[:, :lq_pad, :], w_tok[:, :lq_pad, :], lq_ref[...])
        pooled_d = pool(e_tok[:, lq_pad:, :], w_tok[:, lq_pad:, :], ld_ref[...])

        # Single first-layer matmul on the lane-concat (TB, 2E).
        x = jnp.concatenate([pooled_q, pooled_d], axis=1)               # (TB, 2E) f32

        for li in range(num_layers):
            W = wrefs[2 * li][...]             # bf16
            b = wrefs[2 * li + 1][...]         # f32
            if li < num_layers - 1:
                x = jnp.maximum(
                    jnp.dot(x.astype(W.dtype), W,
                            preferred_element_type=jnp.float32) + b, 0.0)
                # nn.Dropout is identity at inference.
            else:
                xb = x.astype(W.dtype)
                if lane_dense:
                    # W is the output row (1, H); produce (1, TB) so the store is
                    # lane-dense (no masked (TB, 1) partial stores).
                    out_ref[...] = jax.lax.dot_general(
                        W, xb, (((1,), (1,)), ((), ())),
                        preferred_element_type=jnp.float32) + b
                else:
                    out_ref[...] = jax.lax.dot_general(
                        xb, W, (((1,), (1,)), ((), ())),
                        preferred_element_type=jnp.float32) + b

    return kernel


def score_model_forward(q, doc, lengths_q, lengths_d, params, tile_b=None):
    """params: dict with 'emb' (V,E), 'wa_row' (1,V), 'Ws' list, 'bs' list (PyTorch-eq MLP)."""
    B, Lq = q.shape
    _, Ld = doc.shape
    V, E = params["emb"].shape
    Ws, bs = params["Ws"], params["bs"]
    num_layers = len(Ws)
    assert num_layers >= 1

    # Pad each segment to a multiple of 8 so in-kernel sublane slices / reshapes are
    # tile-aligned; padded positions are masked out by the length-based softmax mask.
    lq_pad = _round_up(Lq, 8)
    ld_pad = _round_up(Ld, 8)
    ltot = lq_pad + ld_pad

    # ---- generation-aware VMEM budget & batch tile ----------------------------------
    try:
        vmem_cap = int(pltpu.get_tpu_info().vmem_capacity_bytes)
    except Exception:
        vmem_cap = 64 * 1024 * 1024            # conservative fallback (v7x-sized)
    # 64 MiB limit on v5e/v6e (128 MiB physical), 48 MiB on v7x (64 MiB physical).
    vmem_limit = int(min(vmem_cap * 3 // 4, 64 * 1024 * 1024))

    weight_bytes = sum(2 * int(W.size) for W in Ws) + sum(4 * int(b.size) for b in bs)
    resident = 2 * (V * E * 2 + V * 2) + 2 * weight_bytes      # (conservatively 2x buffered)
    per_row = (ltot * V * 2                    # bf16 one-hot
               + ltot * (E + 1) * 4            # f32 gathered embeddings + logits
               + 2 * ltot * 4                  # double-buffered int32 token block
               + 1024)                         # pooled / hidden activations, slack

    if tile_b is None:
        budget = vmem_limit // 2               # headroom for pipelining / compiler scratch
        # 256-row tiles fill v6e's 256-wide MXU (128 MiB VMEM); v7x is capped by the
        # budget; on v5e a 256-row tile just loops the 128-wide MXU (harmless).
        max_cand = 256 if vmem_cap >= 100 * 1024 * 1024 else 128
        tile_b = 16
        for cand in (256, 128, 64, 32, 16):
            if cand <= max_cand and resident + cand * per_row <= budget:
                tile_b = cand
                break
        tile_b = min(tile_b, max(16, _round_up(B, 16)))   # multiple of 16: bf16 packing (v5e)

    B_pad = _round_up(B, tile_b)
    pad_b = B_pad - B
    n_steps = B_pad // tile_b

    # Lane-dense (1, B_pad) output requires the (8,128) block rule: tile_b % 128 == 0 or
    # a single grid step; otherwise fall back to the (B_pad, 1) column layout.
    lane_dense = (tile_b % 128 == 0) or (n_steps == 1)

    # ---- operand packing (wrapper-side plumbing; keeps the kernel relayout-free) ----
    tok = jnp.concatenate(
        [jnp.pad(q.astype(jnp.int32), ((0, 0), (0, lq_pad - Lq))),
         jnp.pad(doc.astype(jnp.int32), ((0, 0), (0, ld_pad - Ld)))], axis=1)
    tok = jnp.pad(tok, ((0, pad_b), (0, 0)))
    # Pad batch lengths with 1 (not 0) so padded rows stay finite; they are sliced off below.
    lq_p = jnp.pad(lengths_q.reshape(B, 1).astype(jnp.int32), ((0, pad_b), (0, 0)),
                   constant_values=1)
    ld_p = jnp.pad(lengths_d.reshape(B, 1).astype(jnp.int32), ((0, pad_b), (0, 0)),
                   constant_values=1)

    # MXU operands in bf16 (f32 accumulation inside the kernel); VPU-side math stays f32.
    emb_bf = params["emb"].astype(jnp.bfloat16)                    # (V, E)
    wa_col = params["wa_row"].reshape(V, 1).astype(jnp.bfloat16)   # (V, 1)

    layer_args = []
    for li in range(num_layers):
        W = Ws[li]
        b = bs[li]
        if li == num_layers - 1:
            W = W.reshape(-1, 1).T            # output layer passed as a (1, H_last) row
        layer_args.append(W.astype(jnp.bfloat16))
        layer_args.append(b.reshape(1, -1).astype(jnp.float32))

    def const_spec(a):
        return pl.BlockSpec(a.shape, lambda i: (0, 0))

    in_specs = [
        pl.BlockSpec((tile_b, ltot), lambda i: (i, 0)),   # query||doc tokens
        pl.BlockSpec((tile_b, 1), lambda i: (i, 0)),      # lengths_q
        pl.BlockSpec((tile_b, 1), lambda i: (i, 0)),      # lengths_d
        const_spec(emb_bf),                               # embedding table (resident)
        const_spec(wa_col),                               # per-vocab pooling weights
    ] + [const_spec(a) for a in layer_args]

    if lane_dense:
        out_shape = jax.ShapeDtypeStruct((1, B_pad), jnp.float32)
        out_spec = pl.BlockSpec((1, tile_b), lambda i: (0, i))
    else:
        out_shape = jax.ShapeDtypeStruct((B_pad, 1), jnp.float32)
        out_spec = pl.BlockSpec((tile_b, 1), lambda i: (i, 0))

    out = pl.pallas_call(
        make_score_kernel(num_layers, lq_pad, lane_dense),
        out_shape=out_shape,
        grid=(n_steps,),
        in_specs=in_specs,
        out_specs=out_spec,
        compiler_params=pltpu.CompilerParams(
            dimension_semantics=("parallel",),
            vmem_limit_bytes=vmem_limit,
        ),
    )(tok, lq_p, ld_p, emb_bf, wa_col, *layer_args)

    if lane_dense:
        return out[0, :B].reshape(B, 1)
    return out[:B]


def reference_forward(q, doc, lengths_q, lengths_d, params):
    """Pure-JAX (f32) replica of the PyTorch forward (Dropout = identity)."""
    emb_table = params["emb"]
    wa = params["wa_row"].reshape(-1, 1)      # (V, 1)

    def wavg(tok, lens):
        e = emb_table[tok]                                   # (B, L, E)
        w = wa[tok]                                          # (B, L, 1)
        L = tok.shape[1]
        mask = jnp.arange(L)[None, :] < lens                 # (B, L)
        w = jnp.where(mask[..., None], w, -jnp.inf)
        w = jax.nn.softmax(w, axis=1)
        return (w * e * mask[..., None].astype(jnp.float32)).sum(axis=1)

    x = jnp.concatenate([wavg(q, lengths_q), wavg(doc, lengths_d)], axis=1)
    Ws, bs = params["Ws"], params["bs"]
    for i, (W, b) in enumerate(zip(Ws, bs)):
        x = x @ W + b
        if i < len(Ws) - 1:
            x = jnp.maximum(x, 0.0)
    return x


if __name__ == "__main__":
    # Small, deterministic configuration consistent with the module.
    V, E = 64, 32                 # vocab_size, embedding_dim
    hidden_sizes = (32, 16)
    B, Lq, Ld = 2, 8, 16

    key = jax.random.PRNGKey(0)
    k_emb, k_wa, k_q, k_d, k_w = jax.random.split(key, 5)

    q = jax.random.randint(k_q, (B, Lq), 0, V, dtype=jnp.int32)
    doc = jax.random.randint(k_d, (B, Ld), 0, V, dtype=jnp.int32)
    lengths_q = jnp.array([[5], [8]], dtype=jnp.int32)
    lengths_d = jnp.array([[10], [16]], dtype=jnp.int32)

    emb_table = jax.random.normal(k_emb, (V, E), dtype=jnp.float32) * 0.5
    wa_row = jax.random.normal(k_wa, (1, V), dtype=jnp.float32) * 0.2   # weights='random'

    dims = [2 * E] + list(hidden_sizes) + [1]
    Ws, bs = [], []
    wkeys = jax.random.split(k_w, 2 * (len(dims) - 1))
    for i in range(len(dims) - 1):
        scale = 1.0 / jnp.sqrt(jnp.float32(dims[i]))
        Ws.append(jax.random.normal(wkeys[2 * i], (dims[i], dims[i + 1]), jnp.float32) * scale)
        bs.append(jax.random.normal(wkeys[2 * i + 1], (dims[i + 1],), jnp.float32) * 0.1)

    params = {"emb": emb_table, "wa_row": wa_row, "Ws": Ws, "bs": bs}

    out = jax.block_until_ready(score_model_forward(q, doc, lengths_q, lengths_d, params))
    ref = jax.block_until_ready(reference_forward(q, doc, lengths_q, lengths_d, params))

    assert out.shape == (B, 1)
    # Tolerance accounts for bf16 MXU operands + EUP approx reciprocal vs the f32 reference.
    assert jnp.allclose(out, ref, atol=2e-2, rtol=2e-2), (out, ref)

    print("KERNEL_OK")
</pallas_src>

<mosaic_0001>
module attributes {stable_mosaic.version = 11 : i64} {
  func.func @kernel(%arg0: i32, %arg1: memref<16x24xi32, #tpu.memory_space<vmem>>, %arg2: memref<16x1xi32, #tpu.memory_space<vmem>>, %arg3: memref<16x1xi32, #tpu.memory_space<vmem>>, %arg4: memref<64x32xbf16, #tpu.memory_space<vmem>>, %arg5: memref<64x1xbf16, #tpu.memory_space<vmem>>, %arg6: memref<64x32xbf16, #tpu.memory_space<vmem>>, %arg7: memref<1x32xf32, #tpu.memory_space<vmem>>, %arg8: memref<32x16xbf16, #tpu.memory_space<vmem>>, %arg9: memref<1x16xf32, #tpu.memory_space<vmem>>, %arg10: memref<1x16xbf16, #tpu.memory_space<vmem>>, %arg11: memref<1x1xf32, #tpu.memory_space<vmem>>, %arg12: memref<1x16xf32, #tpu.memory_space<vmem>>) attributes {dimension_semantics = [#tpu.dimension_semantics<parallel>], iteration_bounds = array<i64: 1>, scalar_prefetch = 0 : i64, scratch_operands = 0 : i64, tpu.core_type = #tpu.core_type<tc>, window_params = [{transform_indices = @transform_0, window_bounds = array<i64: 16, 24>}, {transform_indices = @transform_1, window_bounds = array<i64: 16, 1>}, {transform_indices = @transform_2, window_bounds = array<i64: 16, 1>}, {pipeline_mode = #tpu.pipeline_mode<synchronous>, transform_indices = @transform_3, window_bounds = array<i64: 64, 32>}, {pipeline_mode = #tpu.pipeline_mode<synchronous>, transform_indices = @transform_4, window_bounds = array<i64: 64, 1>}, {pipeline_mode = #tpu.pipeline_mode<synchronous>, transform_indices = @transform_5, window_bounds = array<i64: 64, 32>}, {pipeline_mode = #tpu.pipeline_mode<synchronous>, transform_indices = @transform_6, window_bounds = array<i64: 1, 32>}, {pipeline_mode = #tpu.pipeline_mode<synchronous>, transform_indices = @transform_7, window_bounds = array<i64: 32, 16>}, {pipeline_mode = #tpu.pipeline_mode<synchronous>, transform_indices = @transform_8, window_bounds = array<i64: 1, 16>}, {pipeline_mode = #tpu.pipeline_mode<synchronous>, transform_indices = @transform_9, window_bounds = array<i64: 1, 16>}, {pipeline_mode = #tpu.pipeline_mode<synchronous>, transform_indices = @transform_10, window_bounds = array<i64: 1, 1>}, {transform_indices = @transform_11, window_bounds = array<i64: 1, 16>}]} {
    %c0 = arith.constant 0 : index
    %c0_0 = arith.constant 0 : index
    %0 = vector.load %arg1[%c0, %c0_0] : memref<16x24xi32, #tpu.memory_space<vmem>>, vector<16x24xi32>
    %c0_1 = arith.constant 0 : index
    %c0_2 = arith.constant 0 : index
    %1 = vector.load %arg4[%c0_1, %c0_2] : memref<64x32xbf16, #tpu.memory_space<vmem>>, vector<64x32xbf16>
    %c0_3 = arith.constant 0 : index
    %c0_4 = arith.constant 0 : index
    %2 = vector.load %arg5[%c0_3, %c0_4] : memref<64x1xbf16, #tpu.memory_space<vmem>>, vector<64x1xbf16>
    %3 = tpu.iota {dimensions = array<i32: 2>} : vector<16x24x64xi32>
    %4 = vector.shape_cast %0 : vector<16x24xi32> to vector<16x24x1xi32>
    %5 = vector.broadcast %4 : vector<16x24x1xi32> to vector<16x24x64xi32>
    %6 = arith.cmpi eq, %3, %5 : vector<16x24x64xi32>
    %7 = arith.extui %6 : vector<16x24x64xi1> to vector<16x24x64xi32>
    %8 = arith.sitofp %7 : vector<16x24x64xi32> to vector<16x24x64xf32>
    %9 = arith.truncf %8 : vector<16x24x64xf32> to vector<16x24x64xbf16>
    %10 = vector.shape_cast %9 : vector<16x24x64xbf16> to vector<384x64xbf16>
    %cst = arith.constant dense<0.000000e+00> : vector<384x32xf32>
    %11 = tpu.matmul %10, %1, %cst {dimension_numbers = #tpu.dot_dimension_numbers<[1], [0], [0], [1], [0, 0, 1, 1], [], []>} : vector<384x64xbf16>, vector<64x32xbf16>, vector<384x32xf32> -> vector<384x32xf32>
    %cst_5 = arith.constant dense<0.000000e+00> : vector<384x1xf32>
    %12 = tpu.matmul %10, %2, %cst_5 {dimension_numbers = #tpu.dot_dimension_numbers<[1], [0], [0], [1], [0, 0, 1, 1], [], []>} : vector<384x64xbf16>, vector<64x1xbf16>, vector<384x1xf32> -> vector<384x1xf32>
    %13 = vector.shape_cast %11 : vector<384x32xf32> to vector<16x24x32xf32>
    %14 = vector.shape_cast %12 : vector<384x1xf32> to vector<16x24x1xf32>
    %15 = vector.extract_strided_slice %13 {offsets = [0, 0, 0], sizes = [16, 8, 32], strides = [1, 1, 1]} : vector<16x24x32xf32> to vector<16x8x32xf32>
    %16 = vector.extract_strided_slice %14 {offsets = [0, 0, 0], sizes = [16, 8, 1], strides = [1, 1, 1]} : vector<16x24x1xf32> to vector<16x8x1xf32>
    %c0_6 = arith.constant 0 : index
    %c0_7 = arith.constant 0 : index
    %17 = vector.load %arg2[%c0_6, %c0_7] : memref<16x1xi32, #tpu.memory_space<vmem>>, vector<16x1xi32>
    %18 = tpu.iota {dimensions = array<i32: 1>} : vector<16x8x1xi32>
    %19 = vector.shape_cast %17 : vector<16x1xi32> to vector<16x1x1xi32>
    %20 = vector.broadcast %19 : vector<16x1x1xi32> to vector<16x8x1xi32>
    %21 = arith.cmpi slt, %18, %20 : vector<16x8x1xi32>
    %cst_8 = arith.constant 0xFF800000 : f32
    %22 = vector.broadcast %cst_8 : f32 to vector<16x8x1xf32>
    %23 = arith.select %21, %16, %22 : vector<16x8x1xi1>, vector<16x8x1xf32>
    %cst_9 = arith.constant dense<0xFF800000> : vector<16x1xf32>
    %24 = vector.multi_reduction <maximumf>, %23, %cst_9 [1] : vector<16x8x1xf32> to vector<16x1xf32>
    %25 = vector.shape_cast %24 : vector<16x1xf32> to vector<16x1x1xf32>
    %26 = vector.broadcast %25 : vector<16x1x1xf32> to vector<16x8x1xf32>
    %27 = arith.subf %23, %26 : vector<16x8x1xf32>
    %28 = math.exp %27 : vector<16x8x1xf32>
    %cst_10 = arith.constant dense<0.000000e+00> : vector<16x1xf32>
    %29 = vector.multi_reduction <add>, %28, %cst_10 [1] : vector<16x8x1xf32> to vector<16x1xf32>
    %30 = vector.shape_cast %29 : vector<16x1xf32> to vector<16x1x1xf32>
    %31 = tpu.reciprocal %30 {approx = true} : vector<16x1x1xf32> -> vector<16x1x1xf32>
    %32 = vector.broadcast %31 : vector<16x1x1xf32> to vector<16x8x1xf32>
    %33 = arith.mulf %28, %32 : vector<16x8x1xf32>
    %34 = vector.broadcast %33 : vector<16x8x1xf32> to vector<16x8x32xf32>
    %35 = arith.mulf %34, %15 : vector<16x8x32xf32>
    %cst_11 = arith.constant dense<0.000000e+00> : vector<16x32xf32>
    %36 = vector.multi_reduction <add>, %35, %cst_11 [1] : vector<16x8x32xf32> to vector<16x32xf32>
    %37 = vector.extract_strided_slice %13 {offsets = [0, 8, 0], sizes = [16, 16, 32], strides = [1, 1, 1]} : vector<16x24x32xf32> to vector<16x16x32xf32>
    %38 = vector.extract_strided_slice %14 {offsets = [0, 8, 0], sizes = [16, 16, 1], strides = [1, 1, 1]} : vector<16x24x1xf32> to vector<16x16x1xf32>
    %c0_12 = arith.constant 0 : index
    %c0_13 = arith.constant 0 : index
    %39 = vector.load %arg3[%c0_12, %c0_13] : memref<16x1xi32, #tpu.memory_space<vmem>>, vector<16x1xi32>
    %40 = tpu.iota {dimensions = array<i32: 1>} : vector<16x16x1xi32>
    %41 = vector.shape_cast %39 : vector<16x1xi32> to vector<16x1x1xi32>
    %42 = vector.broadcast %41 : vector<16x1x1xi32> to vector<16x16x1xi32>
    %43 = arith.cmpi slt, %40, %42 : vector<16x16x1xi32>
    %cst_14 = arith.constant 0xFF800000 : f32
    %44 = vector.broadcast %cst_14 : f32 to vector<16x16x1xf32>
    %45 = arith.select %43, %38, %44 : vector<16x16x1xi1>, vector<16x16x1xf32>
    %cst_15 = arith.constant dense<0xFF800000> : vector<16x1xf32>
    %46 = vector.multi_reduction <maximumf>, %45, %cst_15 [1] : vector<16x16x1xf32> to vector<16x1xf32>
    %47 = vector.shape_cast %46 : vector<16x1xf32> to vector<16x1x1xf32>
    %48 = vector.broadcast %47 : vector<16x1x1xf32> to vector<16x16x1xf32>
    %49 = arith.subf %45, %48 : vector<16x16x1xf32>
    %50 = math.exp %49 : vector<16x16x1xf32>
    %cst_16 = arith.constant dense<0.000000e+00> : vector<16x1xf32>
    %51 = vector.multi_reduction <add>, %50, %cst_16 [1] : vector<16x16x1xf32> to vector<16x1xf32>
    %52 = vector.shape_cast %51 : vector<16x1xf32> to vector<16x1x1xf32>
    %53 = tpu.reciprocal %52 {approx = true} : vector<16x1x1xf32> -> vector<16x1x1xf32>
    %54 = vector.broadcast %53 : vector<16x1x1xf32> to vector<16x16x1xf32>
    %55 = arith.mulf %50, %54 : vector<16x16x1xf32>
    %56 = vector.broadcast %55 : vector<16x16x1xf32> to vector<16x16x32xf32>
    %57 = arith.mulf %56, %37 : vector<16x16x32xf32>
    %cst_17 = arith.constant dense<0.000000e+00> : vector<16x32xf32>
    %58 = vector.multi_reduction <add>, %57, %cst_17 [1] : vector<16x16x32xf32> to vector<16x32xf32>
    %59 = tpu.concatenate %36, %58 in 1 : vector<16x32xf32>, vector<16x32xf32> -> vector<16x64xf32>
    %c0_18 = arith.constant 0 : index
    %c0_19 = arith.constant 0 : index
    %60 = vector.load %arg6[%c0_18, %c0_19] : memref<64x32xbf16, #tpu.memory_space<vmem>>, vector<64x32xbf16>
    %c0_20 = arith.constant 0 : index
    %c0_21 = arith.constant 0 : index
    %61 = vector.load %arg7[%c0_20, %c0_21] : memref<1x32xf32, #tpu.memory_space<vmem>>, vector<1x32xf32>
    %62 = arith.truncf %59 : vector<16x64xf32> to vector<16x64xbf16>
    %cst_22 = arith.constant dense<0.000000e+00> : vector<16x32xf32>
    %63 = tpu.matmul %62, %60, %cst_22 {dimension_numbers = #tpu.dot_dimension_numbers<[1], [0], [0], [1], [0, 0, 1, 1], [], []>} : vector<16x64xbf16>, vector<64x32xbf16>, vector<16x32xf32> -> vector<16x32xf32>
    %64 = vector.broadcast %61 : vector<1x32xf32> to vector<16x32xf32>
    %65 = arith.addf %63, %64 : vector<16x32xf32>
    %cst_23 = arith.constant 0.000000e+00 : f32
    %66 = vector.broadcast %cst_23 : f32 to vector<16x32xf32>
    %67 = arith.maximumf %65, %66 : vector<16x32xf32>
    %c0_24 = arith.constant 0 : index
    %c0_25 = arith.constant 0 : index
    %68 = vector.load %arg8[%c0_24, %c0_25] : memref<32x16xbf16, #tpu.memory_space<vmem>>, vector<32x16xbf16>
    %c0_26 = arith.constant 0 : index
    %c0_27 = arith.constant 0 : index
    %69 = vector.load %arg9[%c0_26, %c0_27] : memref<1x16xf32, #tpu.memory_space<vmem>>, vector<1x16xf32>
    %70 = arith.truncf %67 : vector<16x32xf32> to vector<16x32xbf16>
    %cst_28 = arith.constant dense<0.000000e+00> : vector<16x16xf32>
    %71 = tpu.matmul %70, %68, %cst_28 {dimension_numbers = #tpu.dot_dimension_numbers<[1], [0], [0], [1], [0, 0, 1, 1], [], []>} : vector<16x32xbf16>, vector<32x16xbf16>, vector<16x16xf32> -> vector<16x16xf32>
    %72 = vector.broadcast %69 : vector<1x16xf32> to vector<16x16xf32>
    %73 = arith.addf %71, %72 : vector<16x16xf32>
    %cst_29 = arith.constant 0.000000e+00 : f32
    %74 = vector.broadcast %cst_29 : f32 to vector<16x16xf32>
    %75 = arith.maximumf %73, %74 : vector<16x16xf32>
    %c0_30 = arith.constant 0 : index
    %c0_31 = arith.constant 0 : index
    %76 = vector.load %arg10[%c0_30, %c0_31] : memref<1x16xbf16, #tpu.memory_space<vmem>>, vector<1x16xbf16>
    %c0_32 = arith.constant 0 : index
    %c0_33 = arith.constant 0 : index
    %77 = vector.load %arg11[%c0_32, %c0_33] : memref<1x1xf32, #tpu.memory_space<vmem>>, vector<1x1xf32>
    %78 = arith.truncf %75 : vector<16x16xf32> to vector<16x16xbf16>
    %cst_34 = arith.constant dense<0.000000e+00> : vector<1x16xf32>
    %79 = tpu.matmul %76, %78, %cst_34 {dimension_numbers = #tpu.dot_dimension_numbers<[1], [1], [0], [0], [0, 0, 1, 0], [], []>} : vector<1x16xbf16>, vector<16x16xbf16>, vector<1x16xf32> -> vector<1x16xf32>
    %80 = vector.broadcast %77 : vector<1x1xf32> to vector<1x16xf32>
    %81 = arith.addf %79, %80 : vector<1x16xf32>
    %c0_35 = arith.constant 0 : index
    %c0_36 = arith.constant 0 : index
    %82 = vector.load %arg12[%c0_35, %c0_36] : memref<1x16xf32, #tpu.memory_space<vmem>>, vector<1x16xf32>
    tpu.vector_store %arg12[%c0_35, %c0_36], %81 {strides = array<i32>} : memref<1x16xf32, #tpu.memory_space<vmem>>, vector<1x16xf32>,
    return
  }
  func.func @transform_0(%arg0: i32) -> (i32, i32) {
    %c0_i32 = arith.constant 0 : i32
    %c0_i32_0 = arith.constant 0 : i32
    return %arg0, %c0_i32 : i32, i32
  }
  func.func @transform_1(%arg0: i32) -> (i32, i32) {
    %c0_i32 = arith.constant 0 : i32
    %c0_i32_0 = arith.constant 0 : i32
    return %arg0, %c0_i32 : i32, i32
  }
  func.func @transform_2(%arg0: i32) -> (i32, i32) {
    %c0_i32 = arith.constant 0 : i32
    %c0_i32_0 = arith.constant 0 : i32
    return %arg0, %c0_i32 : i32, i32
  }
  func.func @transform_3(%arg0: i32) -> (i32, i32) {
    %c0_i32 = arith.constant 0 : i32
    %c0_i32_0 = arith.constant 0 : i32
    %c0_i32_1 = arith.constant 0 : i32
    return %c0_i32, %c0_i32_0 : i32, i32
  }
  func.func @transform_4(%arg0: i32) -> (i32, i32) {
    %c0_i32 = arith.constant 0 : i32
    %c0_i32_0 = arith.constant 0 : i32
    %c0_i32_1 = arith.constant 0 : i32
    return %c0_i32, %c0_i32_0 : i32, i32
  }
  func.func @transform_5(%arg0: i32) -> (i32, i32) {
    %c0_i32 = arith.constant 0 : i32
    %c0_i32_0 = arith.constant 0 : i32
    %c0_i32_1 = arith.constant 0 : i32
    return %c0_i32, %c0_i32_0 : i32, i32
  }
  func.func @transform_6(%arg0: i32) -> (i32, i32) {
    %c0_i32 = arith.constant 0 : i32
    %c0_i32_0 = arith.constant 0 : i32
    %c0_i32_1 = arith.constant 0 : i32
    return %c0_i32, %c0_i32_0 : i32, i32
  }
  func.func @transform_7(%arg0: i32) -> (i32, i32) {
    %c0_i32 = arith.constant 0 : i32
    %c0_i32_0 = arith.constant 0 : i32
    %c0_i32_1 = arith.constant 0 : i32
    return %c0_i32, %c0_i32_0 : i32, i32
  }
  func.func @transform_8(%arg0: i32) -> (i32, i32) {
    %c0_i32 = arith.constant 0 : i32
    %c0_i32_0 = arith.constant 0 : i32
    %c0_i32_1 = arith.constant 0 : i32
    return %c0_i32, %c0_i32_0 : i32, i32
  }
  func.func @transform_9(%arg0: i32) -> (i32, i32) {
    %c0_i32 = arith.constant 0 : i32
    %c0_i32_0 = arith.constant 0 : i32
    %c0_i32_1 = arith.constant 0 : i32
    return %c0_i32, %c0_i32_0 : i32, i32
  }
  func.func @transform_10(%arg0: i32) -> (i32, i32) {
    %c0_i32 = arith.constant 0 : i32
    %c0_i32_0 = arith.constant 0 : i32
    %c0_i32_1 = arith.constant 0 : i32
    return %c0_i32, %c0_i32_0 : i32, i32
  }
  func.func @transform_11(%arg0: i32) -> (i32, i32) {
    %c0_i32 = arith.constant 0 : i32
    %c0_i32_0 = arith.constant 0 : i32
    return %c0_i32, %arg0 : i32, i32
  }
}

</mosaic_0001>

<llo_original>
// kernel: tpu_custom_call.1
$region0: #{tpu_custom_call.1}
  #allocation0 [shape = 'u32[]', space=smem, size = 0x4, offset = 0x4, fixed_abs, tag = 'smem constant byte address 0x4 - core index']
  #allocation1 [shape = 'u32[144,128]{1,0:T(1,128)}', space=vmem, size = 0x12000, scoped, tag = 'internal scratch']
  #allocation2 [shape = 'f32[1,1]{1,0:T(1,128)S(1)}', space=vmem, size = 0x200, scoped, tag = 'scoped memory for tpu_custom_call.1']
  %s0 = inlined_call_operand.vmem [shape: s32[16,24], index: 0, kind: input, shape index: {}]
  %s1 = inlined_call_operand.vmem [shape: s32[16,1], index: 1, kind: input, shape index: {}]
  %s2 = inlined_call_operand.vmem [shape: s32[16,1], index: 2, kind: input, shape index: {}]
  %s3 = inlined_call_operand.vmem [shape: bf16[64,32], index: 3, kind: input, shape index: {}]
  %s4 = inlined_call_operand.vmem [shape: bf16[64,1], index: 4, kind: input, shape index: {}]
  %s5 = inlined_call_operand.vmem [shape: bf16[64,32], index: 5, kind: input, shape index: {}]
  %s6 = inlined_call_operand.vmem [shape: f32[1,32], index: 6, kind: input, shape index: {}]
  %s7 = inlined_call_operand.vmem [shape: bf16[32,16], index: 7, kind: input, shape index: {}]
  %s8 = inlined_call_operand.vmem [shape: f32[1,16], index: 8, kind: input, shape index: {}]
  %s9 = inlined_call_operand.vmem [shape: bf16[1,16], index: 9, kind: input, shape index: {}]
  %s10 = inlined_call_operand.<no memory space> [shape: f32[1,1], index: 10, kind: input, shape index: {}]
  %s11 = inlined_call_operand.hbm [shape: f32[1,16], index: 11, kind: output, shape index: {}]
  %s12 = sld [smem:[#allocation0]]
  $region54: #{tpu_custom_call.1} parent=0
    _
  %s14 = ssub.s32 1, %s12
  %s15 = scalar_select 0, %s14, %s12
  %v16 = vstv %s10
  %17 = vst [vmem:[#allocation2] sm:$0x1] %v16
  $region1: #{tpu_custom_call.1} parent=0
    #allocation3 [shape = 'u8[512]{0}', space=vmem, size = 0x400, scoped, tag = 'output window, operand 0, single buffered']
    #allocation4 [shape = 's32[1]{0}', space=sflag, size = 0x4, scoped, tag = 'scoped memory for tpu_custom_call.1']
    %18 = vsyncpa [#allocation4], 0
    // Predicated region
    $region2: #{tpu_custom_call.1} parent=1 // pred_check
      _
    $region3: #{tpu_custom_call.1} parent=1 // pred_check_branch
      %20 = sbr.rel (0) target = $region5
    $region4: #{tpu_custom_call.1} parent=1 // pred_region
      _
    $region5: #{tpu_custom_call.1} parent=1 // pred_fallthru
      _
    // Predicated region
    $region6: #{tpu_custom_call.1} parent=1 // pred_check
      _
    $region7: #{tpu_custom_call.1} parent=1 // pred_check_branch
      %22 = sbr.rel (0) target = $region9
    $region8: #{tpu_custom_call.1} parent=1 // pred_region
      _
    $region9: #{tpu_custom_call.1} parent=1 // pred_fallthru
      _
    // Predicated region
    $region10: #{tpu_custom_call.1} parent=1 // pred_check
      _
    $region11: #{tpu_custom_call.1} parent=1 // pred_check_branch
      %24 = sbr.rel (0) target = $region13
    $region12: #{tpu_custom_call.1} parent=1 // pred_region
      _
    $region13: #{tpu_custom_call.1} parent=1 // pred_fallthru
      _
    // Predicated region
    $region14: #{tpu_custom_call.1} parent=1 // pred_check
      _
    $region15: #{tpu_custom_call.1} parent=1 // pred_check_branch
      %26 = sbr.rel (0) target = $region17
    $region16: #{tpu_custom_call.1} parent=1 // pred_region
      _
    $region17: #{tpu_custom_call.1} parent=1 // pred_fallthru
      _
    // Predicated region
    $region18: #{tpu_custom_call.1} parent=1 // pred_check
      _
    $region19: #{tpu_custom_call.1} parent=1 // pred_check_branch
      %28 = sbr.rel (0) target = $region21
    $region20: #{tpu_custom_call.1} parent=1 // pred_region
      _
    $region21: #{tpu_custom_call.1} parent=1 // pred_fallthru
      _
    // Predicated region
    $region22: #{tpu_custom_call.1} parent=1 // pred_check
      _
    $region23: #{tpu_custom_call.1} parent=1 // pred_check_branch
      %30 = sbr.rel (0) target = $region25
    $region24: #{tpu_custom_call.1} parent=1 // pred_region
      _
    $region25: #{tpu_custom_call.1} parent=1 // pred_fallthru
      _
    // Predicated region
    $region26: #{tpu_custom_call.1} parent=1 // pred_check
      _
    $region27: #{tpu_custom_call.1} parent=1 // pred_check_branch
      %32 = sbr.rel (0) target = $region29
    $region28: #{tpu_custom_call.1} parent=1 // pred_region
      _
    $region29: #{tpu_custom_call.1} parent=1 // pred_fallthru
      _
    // Predicated region
    $region30: #{tpu_custom_call.1} parent=1 // pred_check
      _
    $region31: #{tpu_custom_call.1} parent=1 // pred_check_branch
      %34 = sbr.rel (0) target = $region33
    $region32: #{tpu_custom_call.1} parent=1 // pred_region
      _
    $region33: #{tpu_custom_call.1} parent=1 // pred_fallthru
      _
    // Predicated region
    $region34: #{tpu_custom_call.1} parent=1 // pred_check
      _
    $region35: #{tpu_custom_call.1} parent=1 // pred_check_branch
      %36 = sbr.rel (0) target = $region37
    $region36: #{tpu_custom_call.1} parent=1 // pred_region
      _
    $region37: #{tpu_custom_call.1} parent=1 // pred_fallthru
      _
    // Predicated region
    $region38: #{tpu_custom_call.1} parent=1 // pred_check
      _
    $region39: #{tpu_custom_call.1} parent=1 // pred_check_branch
      %38 = sbr.rel (0) target = $region41
    $region40: #{tpu_custom_call.1} parent=1 // pred_region
      _
    $region41: #{tpu_custom_call.1} parent=1 // pred_fallthru
      _
    // Predicated region
    $region42: #{tpu_custom_call.1} parent=1 // pred_check
      _
    $region43: #{tpu_custom_call.1} parent=1 // pred_check_branch
      %40 = sbr.rel (0) target = $region45
    $region44: #{tpu_custom_call.1} parent=1 // pred_region
      _
    $region45: #{tpu_custom_call.1} parent=1 // pred_fallthru
      _
    %v42 = vld [vmem:[%s0] sm:$0xff]
    %v43 = vld [vmem:[%s0 + $0x8] sm:$0xff]
    %v44 = vld [vmem:[%s3] sm:$0xf]
    %v45 = vld [vmem:[%s3 + $0x4] sm:$0xf]
    %v46 = vld [vmem:[%s3 + $0x8] sm:$0xf]
    %v47 = vld [vmem:[%s3 + $0xc] sm:$0xf]
    %v48 = vld [vmem:[%s3 + $0x10] sm:$0xf]
    %v49 = vld [vmem:[%s3 + $0x14] sm:$0xf]
    %v50 = vld [vmem:[%s3 + $0x18] sm:$0xf]
    %v51 = vld [vmem:[%s3 + $0x1c] sm:$0xf]
    %v52 = vld [vmem:[%s4] sm:$0xf]
    %v53 = vld [vmem:[%s4 + $0x4] sm:$0xf]
    %v54 = vld [vmem:[%s4 + $0x8] sm:$0xf]
    %v55 = vld [vmem:[%s4 + $0xc] sm:$0xf]
    %v56 = vld [vmem:[%s4 + $0x10] sm:$0xf]
    %v57 = vld [vmem:[%s4 + $0x14] sm:$0xf]
    %v58 = vld [vmem:[%s4 + $0x18] sm:$0xf]
    %v59 = vld [vmem:[%s4 + $0x1c] sm:$0xf]
    %v60 = vlaneseq
    %v61 = vand.u32 %v60, 127
    %v62 = vlaneseq
    %v63 = vshrl.u32 %v62, 7
    %v64 = vsub.s32 0, %v63
    %v65 = vrot.slane %v42, %v64
    %67 = vbcast.lane.b32.xlu0 %v65, 256
    %v68 = vpop.permute.xlu0 %67
    %s70 = sor.u32 256, 8
    %71 = vbcast.lane.b32.xlu0 %v65, %s70
    %v72 = vpop.permute.xlu0 %71
    %s74 = sor.u32 256, 16
    %75 = vbcast.lane.b32.xlu0 %v65, %s74
    %v76 = vpop.permute.xlu0 %75
    %v77 = vlaneseq
    %v78 = vshrl.u32 %v77, 7
    %v79 = vsub.s32 1, %v78
    %v80 = vrot.slane %v42, %v79
    %82 = vbcast.lane.b32.xlu0 %v80, 256
    %v83 = vpop.permute.xlu0 %82
    %s85 = sor.u32 256, 8
    %86 = vbcast.lane.b32.xlu0 %v80, %s85
    %v87 = vpop.permute.xlu0 %86
    %s89 = sor.u32 256, 16
    %90 = vbcast.lane.b32.xlu0 %v80, %s89
    %v91 = vpop.permute.xlu0 %90
    %v92 = vlaneseq
    %v93 = vshrl.u32 %v92, 7
    %v94 = vsub.s32 2, %v93
    %v95 = vrot.slane %v42, %v94
    %97 = vbcast.lane.b32.xlu0 %v95, 256
    %v98 = vpop.permute.xlu0 %97
    %s100 = sor.u32 256, 8
    %101 = vbcast.lane.b32.xlu0 %v95, %s100
    %v102 = vpop.permute.xlu0 %101
    %s104 = sor.u32 256, 16
    %105 = vbcast.lane.b32.xlu0 %v95, %s104
    %v106 = vpop.permute.xlu0 %105
    %v107 = vlaneseq
    %v108 = vshrl.u32 %v107, 7
    %v109 = vsub.s32 3, %v108
    %v110 = vrot.slane %v42, %v109
    %112 = vbcast.lane.b32.xlu0 %v110, 256
    %v113 = vpop.permute.xlu0 %112
    %s115 = sor.u32 256, 8
    %116 = vbcast.lane.b32.xlu0 %v110, %s115
    %v117 = vpop.permute.xlu0 %116
    %s119 = sor.u32 256, 16
    %120 = vbcast.lane.b32.xlu0 %v110, %s119
    %v121 = vpop.permute.xlu0 %120
    %v122 = vlaneseq
    %v123 = vshrl.u32 %v122, 7
    %v124 = vsub.s32 4, %v123
    %v125 = vrot.slane %v42, %v124
    %127 = vbcast.lane.b32.xlu0 %v125, 256
    %v128 = vpop.permute.xlu0 %127
    %s130 = sor.u32 256, 8
    %131 = vbcast.lane.b32.xlu0 %v125, %s130
    %v132 = vpop.permute.xlu0 %131
    %s134 = sor.u32 256, 16
    %135 = vbcast.lane.b32.xlu0 %v125, %s134
    %v136 = vpop.permute.xlu0 %135
    %v137 = vlaneseq
    %v138 = vshrl.u32 %v137, 7
    %v139 = vsub.s32 5, %v138
    %v140 = vrot.slane %v42, %v139
    %142 = vbcast.lane.b32.xlu0 %v140, 256
    %v143 = vpop.permute.xlu0 %142
    %s145 = sor.u32 256, 8
    %146 = vbcast.lane.b32.xlu0 %v140, %s145
    %v147 = vpop.permute.xlu0 %146
    %s149 = sor.u32 256, 16
    %150 = vbcast.lane.b32.xlu0 %v140, %s149
    %v151 = vpop.permute.xlu0 %150
    %v152 = vlaneseq
    %v153 = vshrl.u32 %v152, 7
    %v154 = vsub.s32 6, %v153
    %v155 = vrot.slane %v42, %v154
    %157 = vbcast.lane.b32.xlu0 %v155, 256
    %v158 = vpop.permute.xlu0 %157
    %s160 = sor.u32 256, 8
    %161 = vbcast.lane.b32.xlu0 %v155, %s160
    %v162 = vpop.permute.xlu0 %161
    %s164 = sor.u32 256, 16
    %165 = vbcast.lane.b32.xlu0 %v155, %s164
    %v166 = vpop.permute.xlu0 %165
    %v167 = vlaneseq
    %v168 = vshrl.u32 %v167, 7
    %v169 = vsub.s32 7, %v168
    %v170 = vrot.slane %v42, %v169
    %172 = vbcast.lane.b32.xlu0 %v170, 256
    %v173 = vpop.permute.xlu0 %172
    %s175 = sor.u32 256, 8
    %176 = vbcast.lane.b32.xlu0 %v170, %s175
    %v177 = vpop.permute.xlu0 %176
    %s179 = sor.u32 256, 16
    %180 = vbcast.lane.b32.xlu0 %v170, %s179
    %v181 = vpop.permute.xlu0 %180
    %v182 = vlaneseq
    %v183 = vshrl.u32 %v182, 7
    %v184 = vsub.s32 0, %v183
    %v185 = vrot.slane %v43, %v184
    %187 = vbcast.lane.b32.xlu0 %v185, 256
    %v188 = vpop.permute.xlu0 %187
    %s190 = sor.u32 256, 8
    %191 = vbcast.lane.b32.xlu0 %v185, %s190
    %v192 = vpop.permute.xlu0 %191
    %s194 = sor.u32 256, 16
    %195 = vbcast.lane.b32.xlu0 %v185, %s194
    %v196 = vpop.permute.xlu0 %195
    %v197 = vlaneseq
    %v198 = vshrl.u32 %v197, 7
    %v199 = vsub.s32 1, %v198
    %v200 = vrot.slane %v43, %v199
    %202 = vbcast.lane.b32.xlu0 %v200, 256
    %v203 = vpop.permute.xlu0 %202
    %s205 = sor.u32 256, 8
    %206 = vbcast.lane.b32.xlu0 %v200, %s205
    %v207 = vpop.permute.xlu0 %206
    %s209 = sor.u32 256, 16
    %210 = vbcast.lane.b32.xlu0 %v200, %s209
    %v211 = vpop.permute.xlu0 %210
    %v212 = vlaneseq
    %v213 = vshrl.u32 %v212, 7
    %v214 = vsub.s32 2, %v213
    %v215 = vrot.slane %v43, %v214
    %217 = vbcast.lane.b32.xlu0 %v215, 256
    %v218 = vpop.permute.xlu0 %217
    %s220 = sor.u32 256, 8
    %221 = vbcast.lane.b32.xlu0 %v215, %s220
    %v222 = vpop.permute.xlu0 %221
    %s224 = sor.u32 256, 16
    %225 = vbcast.lane.b32.xlu0 %v215, %s224
    %v226 = vpop.permute.xlu0 %225
    %v227 = vlaneseq
    %v228 = vshrl.u32 %v227, 7
    %v229 = vsub.s32 3, %v228
    %v230 = vrot.slane %v43, %v229
    %232 = vbcast.lane.b32.xlu0 %v230, 256
    %v233 = vpop.permute.xlu0 %232
    %s235 = sor.u32 256, 8
    %236 = vbcast.lane.b32.xlu0 %v230, %s235
    %v237 = vpop.permute.xlu0 %236
    %s239 = sor.u32 256, 16
    %240 = vbcast.lane.b32.xlu0 %v230, %s239
    %v241 = vpop.permute.xlu0 %240
    %v242 = vlaneseq
    %v243 = vshrl.u32 %v242, 7
    %v244 = vsub.s32 4, %v243
    %v245 = vrot.slane %v43, %v244
    %247 = vbcast.lane.b32.xlu0 %v245, 256
    %v248 = vpop.permute.xlu0 %247
    %s250 = sor.u32 256, 8
    %251 = vbcast.lane.b32.xlu0 %v245, %s250
    %v252 = vpop.permute.xlu0 %251
    %s254 = sor.u32 256, 16
    %255 = vbcast.lane.b32.xlu0 %v245, %s254
    %v256 = vpop.permute.xlu0 %255
    %v257 = vlaneseq
    %v258 = vshrl.u32 %v257, 7
    %v259 = vsub.s32 5, %v258
    %v260 = vrot.slane %v43, %v259
    %262 = vbcast.lane.b32.xlu0 %v260, 256
    %v263 = vpop.permute.xlu0 %262
    %s265 = sor.u32 256, 8
    %266 = vbcast.lane.b32.xlu0 %v260, %s265
    %v267 = vpop.permute.xlu0 %266
    %s269 = sor.u32 256, 16
    %270 = vbcast.lane.b32.xlu0 %v260, %s269
    %v271 = vpop.permute.xlu0 %270
    %v272 = vlaneseq
    %v273 = vshrl.u32 %v272, 7
    %v274 = vsub.s32 6, %v273
    %v275 = vrot.slane %v43, %v274
    %277 = vbcast.lane.b32.xlu0 %v275, 256
    %v278 = vpop.permute.xlu0 %277
    %s280 = sor.u32 256, 8
    %281 = vbcast.lane.b32.xlu0 %v275, %s280
    %v282 = vpop.permute.xlu0 %281
    %s284 = sor.u32 256, 16
    %285 = vbcast.lane.b32.xlu0 %v275, %s284
    %v286 = vpop.permute.xlu0 %285
    %v287 = vlaneseq
    %v288 = vshrl.u32 %v287, 7
    %v289 = vsub.s32 7, %v288
    %v290 = vrot.slane %v43, %v289
    %292 = vbcast.lane.b32.xlu0 %v290, 256
    %v293 = vpop.permute.xlu0 %292
    %s295 = sor.u32 256, 8
    %296 = vbcast.lane.b32.xlu0 %v290, %s295
    %v297 = vpop.permute.xlu0 %296
    %s299 = sor.u32 256, 16
    %300 = vbcast.lane.b32.xlu0 %v290, %s299
    %v301 = vpop.permute.xlu0 %300
    %vm302 = vcmp.eq.s32.totalorder %v61, %v68
    %vm303 = vcmp.eq.s32.totalorder %v61, %v72
    %vm304 = vcmp.eq.s32.totalorder %v61, %v76
    %vm305 = vcmp.eq.s32.totalorder %v61, %v83
    %vm306 = vcmp.eq.s32.totalorder %v61, %v87
    %vm307 = vcmp.eq.s32.totalorder %v61, %v91
    %vm308 = vcmp.eq.s32.totalorder %v61, %v98
    %vm309 = vcmp.eq.s32.totalorder %v61, %v102
    %vm310 = vcmp.eq.s32.totalorder %v61, %v106
    %vm311 = vcmp.eq.s32.totalorder %v61, %v113
    %vm312 = vcmp.eq.s32.totalorder %v61, %v117
    %vm313 = vcmp.eq.s32.totalorder %v61, %v121
    %vm314 = vcmp.eq.s32.totalorder %v61, %v128
    %vm315 = vcmp.eq.s32.totalorder %v61, %v132
    %vm316 = vcmp.eq.s32.totalorder %v61, %v136
    %vm317 = vcmp.eq.s32.totalorder %v61, %v143
    %vm318 = vcmp.eq.s32.totalorder %v61, %v147
    %vm319 = vcmp.eq.s32.totalorder %v61, %v151
    %vm320 = vcmp.eq.s32.totalorder %v61, %v158
    %vm321 = vcmp.eq.s32.totalorder %v61, %v162
    %vm322 = vcmp.eq.s32.totalorder %v61, %v166
    %vm323 = vcmp.eq.s32.totalorder %v61, %v173
    %vm324 = vcmp.eq.s32.totalorder %v61, %v177
    %vm325 = vcmp.eq.s32.totalorder %v61, %v181
    %vm326 = vcmp.eq.s32.totalorder %v61, %v188
    %vm327 = vcmp.eq.s32.totalorder %v61, %v192
    %vm328 = vcmp.eq.s32.totalorder %v61, %v196
    %vm329 = vcmp.eq.s32.totalorder %v61, %v203
    %vm330 = vcmp.eq.s32.totalorder %v61, %v207
    %vm331 = vcmp.eq.s32.totalorder %v61, %v211
    %vm332 = vcmp.eq.s32.totalorder %v61, %v218
    %vm333 = vcmp.eq.s32.totalorder %v61, %v222
    %vm334 = vcmp.eq.s32.totalorder %v61, %v226
    %vm335 = vcmp.eq.s32.totalorder %v61, %v233
    %vm336 = vcmp.eq.s32.totalorder %v61, %v237
    %vm337 = vcmp.eq.s32.totalorder %v61, %v241
    %vm338 = vcmp.eq.s32.totalorder %v61, %v248
    %vm339 = vcmp.eq.s32.totalorder %v61, %v252
    %vm340 = vcmp.eq.s32.totalorder %v61, %v256
    %vm341 = vcmp.eq.s32.totalorder %v61, %v263
    %vm342 = vcmp.eq.s32.totalorder %v61, %v267
    %vm343 = vcmp.eq.s32.totalorder %v61, %v271
    %vm344 = vcmp.eq.s32.totalorder %v61, %v278
    %vm345 = vcmp.eq.s32.totalorder %v61, %v282
    %vm346 = vcmp.eq.s32.totalorder %v61, %v286
    %vm347 = vcmp.eq.s32.totalorder %v61, %v293
    %vm348 = vcmp.eq.s32.totalorder %v61, %v297
    %vm349 = vcmp.eq.s32.totalorder %v61, %v301
    %v350 = vsel %vm302, 1, 0
    %v351 = vsel %vm303, 1, 0
    %v352 = vsel %vm304, 1, 0
    %v353 = vsel %vm305, 1, 0
    %v354 = vsel %vm306, 1, 0
    %v355 = vsel %vm307, 1, 0
    %v356 = vsel %vm308, 1, 0
    %v357 = vsel %vm309, 1, 0
    %v358 = vsel %vm310, 1, 0
    %v359 = vsel %vm311, 1, 0
    %v360 = vsel %vm312, 1, 0
    %v361 = vsel %vm313, 1, 0
    %v362 = vsel %vm314, 1, 0
    %v363 = vsel %vm315, 1, 0
    %v364 = vsel %vm316, 1, 0
    %v365 = vsel %vm317, 1, 0
    %v366 = vsel %vm318, 1, 0
    %v367 = vsel %vm319, 1, 0
    %v368 = vsel %vm320, 1, 0
    %v369 = vsel %vm321, 1, 0
    %v370 = vsel %vm322, 1, 0
    %v371 = vsel %vm323, 1, 0
    %v372 = vsel %vm324, 1, 0
    %v373 = vsel %vm325, 1, 0
    %v374 = vsel %vm326, 1, 0
    %v375 = vsel %vm327, 1, 0
    %v376 = vsel %vm328, 1, 0
    %v377 = vsel %vm329, 1, 0
    %v378 = vsel %vm330, 1, 0
    %v379 = vsel %vm331, 1, 0
    %v380 = vsel %vm332, 1, 0
    %v381 = vsel %vm333, 1, 0
    %v382 = vsel %vm334, 1, 0
    %v383 = vsel %vm335, 1, 0
    %v384 = vsel %vm336, 1, 0
    %v385 = vsel %vm337, 1, 0
    %v386 = vsel %vm338, 1, 0
    %v387 = vsel %vm339, 1, 0
    %v388 = vsel %vm340, 1, 0
    %v389 = vsel %vm341, 1, 0
    %v390 = vsel %vm342, 1, 0
    %v391 = vsel %vm343, 1, 0
    %v392 = vsel %vm344, 1, 0
    %v393 = vsel %vm345, 1, 0
    %v394 = vsel %vm346, 1, 0
    %v395 = vsel %vm347, 1, 0
    %v396 = vsel %vm348, 1, 0
    %v397 = vsel %vm349, 1, 0
    %v398 = vcvt.s32.f32 %v350
    %v399 = vcvt.s32.f32 %v351
    %v400 = vcvt.s32.f32 %v352
    %v401 = vcvt.s32.f32 %v353
    %v402 = vcvt.s32.f32 %v354
    %v403 = vcvt.s32.f32 %v355
    %v404 = vcvt.s32.f32 %v356
    %v405 = vcvt.s32.f32 %v357
    %v406 = vcvt.s32.f32 %v358
    %v407 = vcvt.s32.f32 %v359
    %v408 = vcvt.s32.f32 %v360
    %v409 = vcvt.s32.f32 %v361
    %v410 = vcvt.s32.f32 %v362
    %v411 = vcvt.s32.f32 %v363
    %v412 = vcvt.s32.f32 %v364
    %v413 = vcvt.s32.f32 %v365
    %v414 = vcvt.s32.f32 %v366
    %v415 = vcvt.s32.f32 %v367
    %v416 = vcvt.s32.f32 %v368
    %v417 = vcvt.s32.f32 %v369
    %v418 = vcvt.s32.f32 %v370
    %v419 = vcvt.s32.f32 %v371
    %v420 = vcvt.s32.f32 %v372
    %v421 = vcvt.s32.f32 %v373
    %v422 = vcvt.s32.f32 %v374
    %v423 = vcvt.s32.f32 %v375
    %v424 = vcvt.s32.f32 %v376
    %v425 = vcvt.s32.f32 %v377
    %v426 = vcvt.s32.f32 %v378
    %v427 = vcvt.s32.f32 %v379
    %v428 = vcvt.s32.f32 %v380
    %v429 = vcvt.s32.f32 %v381
    %v430 = vcvt.s32.f32 %v382
    %v431 = vcvt.s32.f32 %v383
    %v432 = vcvt.s32.f32 %v384
    %v433 = vcvt.s32.f32 %v385
    %v434 = vcvt.s32.f32 %v386
    %v435 = vcvt.s32.f32 %v387
    %v436 = vcvt.s32.f32 %v388
    %v437 = vcvt.s32.f32 %v389
    %v438 = vcvt.s32.f32 %v390
    %v439 = vcvt.s32.f32 %v391
    %v440 = vcvt.s32.f32 %v392
    %v441 = vcvt.s32.f32 %v393
    %v442 = vcvt.s32.f32 %v394
    %v443 = vcvt.s32.f32 %v395
    %v444 = vcvt.s32.f32 %v396
    %v445 = vcvt.s32.f32 %v397
    %v446 = vpack.c.bf16 %v399, %v398
    %v447 = vpack.c.bf16 %v400, %v400
    %v448 = vpack.c.bf16 %v402, %v401
    %v449 = vpack.c.bf16 %v403, %v403
    %v450 = vpack.c.bf16 %v405, %v404
    %v451 = vpack.c.bf16 %v406, %v406
    %v452 = vpack.c.bf16 %v408, %v407
    %v453 = vpack.c.bf16 %v409, %v409
    %v454 = vpack.c.bf16 %v411, %v410
    %v455 = vpack.c.bf16 %v412, %v412
    %v456 = vpack.c.bf16 %v414, %v413
    %v457 = vpack.c.bf16 %v415, %v415
    %v458 = vpack.c.bf16 %v417, %v416
    %v459 = vpack.c.bf16 %v418, %v418
    %v460 = vpack.c.bf16 %v420, %v419
    %v461 = vpack.c.bf16 %v421, %v421
    %v462 = vpack.c.bf16 %v423, %v422
    %v463 = vpack.c.bf16 %v424, %v424
    %v464 = vpack.c.bf16 %v426, %v425
    %v465 = vpack.c.bf16 %v427, %v427
    %v466 = vpack.c.bf16 %v429, %v428
    %v467 = vpack.c.bf16 %v430, %v430
    %v468 = vpack.c.bf16 %v432, %v431
    %v469 = vpack.c.bf16 %v433, %v433
    %v470 = vpack.c.bf16 %v435, %v434
    %v471 = vpack.c.bf16 %v436, %v436
    %v472 = vpack.c.bf16 %v438, %v437
    %v473 = vpack.c.bf16 %v439, %v439
    %v474 = vpack.c.bf16 %v441, %v440
    %v475 = vpack.c.bf16 %v442, %v442
    %v476 = vpack.c.bf16 %v444, %v443
    %v477 = vpack.c.bf16 %v445, %v445
    %v510 = vunpack.c.l.b16 %v446
    %v511 = vunpack.c.h.b16 %v446
    %v512 = vunpack.c.l.b16 %v447
    %v513 = vunpack.c.l.b16 %v448
    %v514 = vunpack.c.h.b16 %v448
    %v515 = vunpack.c.l.b16 %v449
    %v516 = vunpack.c.l.b16 %v450
    %v517 = vunpack.c.h.b16 %v450
    %v518 = vunpack.c.l.b16 %v451
    %v519 = vunpack.c.l.b16 %v452
    %v520 = vunpack.c.h.b16 %v452
    %v521 = vunpack.c.l.b16 %v453
    %v522 = vunpack.c.l.b16 %v454
    %v523 = vunpack.c.h.b16 %v454
    %v524 = vunpack.c.l.b16 %v455
    %v525 = vunpack.c.l.b16 %v456
    %v526 = vunpack.c.h.b16 %v456
    %v527 = vunpack.c.l.b16 %v457
    %v528 = vunpack.c.l.b16 %v458
    %v529 = vunpack.c.h.b16 %v458
    %v530 = vunpack.c.l.b16 %v459
    %v531 = vunpack.c.l.b16 %v460
    %v532 = vunpack.c.h.b16 %v460
    %v533 = vunpack.c.l.b16 %v461
    %v534 = vunpack.c.l.b16 %v462
    %v535 = vunpack.c.h.b16 %v462
    %v536 = vunpack.c.l.b16 %v463
    %v537 = vunpack.c.l.b16 %v464
    %v538 = vunpack.c.h.b16 %v464
    %v539 = vunpack.c.l.b16 %v465
    %v540 = vunpack.c.l.b16 %v466
    %v541 = vunpack.c.h.b16 %v466
    %v542 = vunpack.c.l.b16 %v467
    %v543 = vunpack.c.l.b16 %v468
    %v544 = vunpack.c.h.b16 %v468
    %v545 = vunpack.c.l.b16 %v469
    %v546 = vunpack.c.l.b16 %v470
    %v547 = vunpack.c.h.b16 %v470
    %v548 = vunpack.c.l.b16 %v471
    %v549 = vunpack.c.l.b16 %v472
    %v550 = vunpack.c.h.b16 %v472
    %v551 = vunpack.c.l.b16 %v473
    %v552 = vunpack.c.l.b16 %v474
    %v553 = vunpack.c.h.b16 %v474
    %v554 = vunpack.c.l.b16 %v475
    %v555 = vunpack.c.l.b16 %v476
    %v556 = vunpack.c.h.b16 %v476
    %v557 = vunpack.c.l.b16 %v477
    %v558 = vpack.c.b16 %v511, %v510
    %v559 = vpack.c.b16 %v513, %v512
    %v560 = vpack.c.b16 %v515, %v514
    %v561 = vpack.c.b16 %v517, %v516
    %v562 = vpack.c.b16 %v519, %v518
    %v563 = vpack.c.b16 %v521, %v520
    %v564 = vpack.c.b16 %v523, %v522
    %v565 = vpack.c.b16 %v525, %v524
    %v566 = vpack.c.b16 %v527, %v526
    %v567 = vpack.c.b16 %v529, %v528
    %v568 = vpack.c.b16 %v531, %v530
    %v569 = vpack.c.b16 %v533, %v532
    %v570 = vpack.c.b16 %v535, %v534
    %v571 = vpack.c.b16 %v537, %v536
    %v572 = vpack.c.b16 %v539, %v538
    %v573 = vpack.c.b16 %v541, %v540
    %v574 = vpack.c.b16 %v543, %v542
    %v575 = vpack.c.b16 %v545, %v544
    %v576 = vpack.c.b16 %v547, %v546
    %v577 = vpack.c.b16 %v549, %v548
    %v578 = vpack.c.b16 %v551, %v550
    %v579 = vpack.c.b16 %v553, %v552
    %v580 = vpack.c.b16 %v555, %v554
    %v581 = vpack.c.b16 %v557, %v556
    %v590 = vunpack.c.l.b16 %v44
    %v591 = vunpack.c.l.b16 %v45
    %v592 = vunpack.c.l.b16 %v46
    %v593 = vunpack.c.l.b16 %v47
    %v594 = vunpack.c.l.b16 %v48
    %v595 = vunpack.c.l.b16 %v49
    %v596 = vunpack.c.l.b16 %v50
    %v597 = vunpack.c.l.b16 %v51
    %v598 = vpack.c.b16 %v591, %v590
    %v599 = vpack.c.b16 %v593, %v592
    %v600 = vpack.c.b16 %v595, %v594
    %v601 = vpack.c.b16 %v597, %v596
    %vm606 = vcmask 523264
    %v608 = vsel %vm606, %v558, 0
    %v611 = vsel %vm606, %v559, 0
    %v614 = vsel %vm606, %v560, 0
    %v617 = vsel %vm606, %v561, 0
    %v620 = vsel %vm606, %v562, 0
    %v623 = vsel %vm606, %v563, 0
    %v626 = vsel %vm606, %v564, 0
    %v629 = vsel %vm606, %v565, 0
    %v632 = vsel %vm606, %v566, 0
    %v635 = vsel %vm606, %v567, 0
    %v638 = vsel %vm606, %v568, 0
    %v641 = vsel %vm606, %v569, 0
    %v644 = vsel %vm606, %v570, 0
    %v647 = vsel %vm606, %v571, 0
    %v650 = vsel %vm606, %v572, 0
    %v653 = vsel %vm606, %v573, 0
    %v656 = vsel %vm606, %v574, 0
    %v659 = vsel %vm606, %v575, 0
    %v662 = vsel %vm606, %v576, 0
    %v665 = vsel %vm606, %v577, 0
    %v668 = vsel %vm606, %v578, 0
    %v671 = vsel %vm606, %v579, 0
    %v674 = vsel %vm606, %v580, 0
    %v677 = vsel %vm606, %v581, 0
    %679 = vmatprep.subr.bf16.mxu0 0
    %680 = vmatpush1.bf16.msra.mxu0 %v598
    %681 = vmatprep.subr.bf16.mxu0 0
    %682 = vmatpush1.bf16.msra.mxu0 %v599
    %683 = vmatprep.subr.bf16.mxu0 0
    %684 = vmatpush1.bf16.msra.mxu0 %v600
    %685 = vmatprep.subr.bf16.mxu0 0
    %686 = vmatpush1.bf16.msra.mxu0 %v601
    %687 = vmatprep.subr.bf16.mxu0 0
    %688 = vmatpush1.bf16.msra.mxu0 0
    %689 = vmatprep.subr.bf16.mxu0 0
    %690 = vmatpush1.bf16.msra.mxu0 0
    %691 = vmatprep.subr.bf16.mxu0 0
    %692 = vmatpush1.bf16.msra.mxu0 0
    %693 = vmatprep.subr.bf16.mxu0 0
    %694 = vmatpush1.bf16.msra.mxu0 0
    %695 = vmatprep.subr.bf16.mxu0 0
    %696 = vmatpush1.bf16.msra.mxu0 0
    %697 = vmatprep.subr.bf16.mxu0 0
    %698 = vmatpush1.bf16.msra.mxu0 0
    %699 = vmatprep.subr.bf16.mxu0 0
    %700 = vmatpush1.bf16.msra.mxu0 0
    %701 = vmatprep.subr.bf16.mxu0 0
    %702 = vmatpush1.bf16.msra.mxu0 0
    %703 = vmatprep.subr.bf16.mxu0 0
    %704 = vmatpush1.bf16.msra.mxu0 0
    %705 = vmatprep.subr.bf16.mxu0 0
    %706 = vmatpush1.bf16.msra.mxu0 0
    %707 = vmatprep.subr.bf16.mxu0 0
    %708 = vmatpush1.bf16.msra.mxu0 0
    %709 = vmatprep.subr.bf16.mxu0 0
    %710 = vmatpush1.bf16.msra.mxu0 0
    %711 = vmatprep.mubr.bf16.mxu0 0
    %712 = vmatmul.mubr.bf16.gmra.mrb[0].mxu0 %v608
    %v713 = vpop.f32.mrb[0].mxu0
    %v714 = vadd.f32 0.0, %v713
    %v715 = vpop.f32.mrb[0].mxu0
    %v716 = vpop.f32.mrb[0].mxu0
    %v717 = vadd.f32 0.0, %v716
    %v718 = vpop.f32.mrb[0].mxu0
    %719 = vmatprep.mubr.bf16.mxu0 0
    %720 = vmatmul.mubr.bf16.gmra.mrb[0].mxu0 %v611
    %v721 = vpop.f32.mrb[0].mxu0
    %v722 = vadd.f32 0.0, %v721
    %v723 = vpop.f32.mrb[0].mxu0
    %v724 = vpop.f32.mrb[0].mxu0
    %v725 = vadd.f32 0.0, %v724
    %v726 = vpop.f32.mrb[0].mxu0
    %727 = vmatprep.mubr.bf16.mxu0 0
    %728 = vmatmul.mubr.bf16.gmra.mrb[0].mxu0 %v614
    %v729 = vpop.f32.mrb[0].mxu0
    %v730 = vadd.f32 0.0, %v729
    %v731 = vpop.f32.mrb[0].mxu0
    %v732 = vpop.f32.mrb[0].mxu0
    %v733 = vadd.f32 0.0, %v732
    %v734 = vpop.f32.mrb[0].mxu0
    %735 = vmatprep.mubr.bf16.mxu0 0
    %736 = vmatmul.mubr.bf16.gmra.mrb[0].mxu0 %v617
    %v737 = vpop.f32.mrb[0].mxu0
    %v738 = vadd.f32 0.0, %v737
    %v739 = vpop.f32.mrb[0].mxu0
    %v740 = vpop.f32.mrb[0].mxu0
    %v741 = vadd.f32 0.0, %v740
    %v742 = vpop.f32.mrb[0].mxu0
    %743 = vmatprep.mubr.bf16.mxu0 0
    %744 = vmatmul.mubr.bf16.gmra.mrb[0].mxu0 %v620
    %v745 = vpop.f32.mrb[0].mxu0
    %v746 = vadd.f32 0.0, %v745
    %v747 = vpop.f32.mrb[0].mxu0
    %v748 = vpop.f32.mrb[0].mxu0
    %v749 = vadd.f32 0.0, %v748
    %v750 = vpop.f32.mrb[0].mxu0
    %751 = vmatprep.mubr.bf16.mxu0 0
    %752 = vmatmul.mubr.bf16.gmra.mrb[0].mxu0 %v623
    %v753 = vpop.f32.mrb[0].mxu0
    %v754 = vadd.f32 0.0, %v753
    %v755 = vpop.f32.mrb[0].mxu0
    %v756 = vpop.f32.mrb[0].mxu0
    %v757 = vadd.f32 0.0, %v756
    %v758 = vpop.f32.mrb[0].mxu0
    %759 = vmatprep.mubr.bf16.mxu0 0
    %760 = vmatmul.mubr.bf16.gmra.mrb[0].mxu0 %v626
    %v761 = vpop.f32.mrb[0].mxu0
    %v762 = vadd.f32 0.0, %v761
    %v763 = vpop.f32.mrb[0].mxu0
    %v764 = vpop.f32.mrb[0].mxu0
    %v765 = vadd.f32 0.0, %v764
    %v766 = vpop.f32.mrb[0].mxu0
    %767 = vmatprep.mubr.bf16.mxu0 0
    %768 = vmatmul.mubr.bf16.gmra.mrb[0].mxu0 %v629
    %v769 = vpop.f32.mrb[0].mxu0
    %v770 = vadd.f32 0.0, %v769
    %v771 = vpop.f32.mrb[0].mxu0
    %v772 = vpop.f32.mrb[0].mxu0
    %v773 = vadd.f32 0.0, %v772
    %v774 = vpop.f32.mrb[0].mxu0
    %775 = vmatprep.mubr.bf16.mxu0 0
    %776 = vmatmul.mubr.bf16.gmra.mrb[0].mxu0 %v632
    %v777 = vpop.f32.mrb[0].mxu0
    %v778 = vadd.f32 0.0, %v777
    %v779 = vpop.f32.mrb[0].mxu0
    %v780 = vpop.f32.mrb[0].mxu0
    %v781 = vadd.f32 0.0, %v780
    %v782 = vpop.f32.mrb[0].mxu0
    %783 = vmatprep.mubr.bf16.mxu0 0
    %784 = vmatmul.mubr.bf16.gmra.mrb[0].mxu0 %v635
    %v785 = vpop.f32.mrb[0].mxu0
    %v786 = vadd.f32 0.0, %v785
    %v787 = vpop.f32.mrb[0].mxu0
    %v788 = vpop.f32.mrb[0].mxu0
    %v789 = vadd.f32 0.0, %v788
    %v790 = vpop.f32.mrb[0].mxu0
    %791 = vmatprep.mubr.bf16.mxu0 0
    %792 = vmatmul.mubr.bf16.gmra.mrb[0].mxu0 %v638
    %v793 = vpop.f32.mrb[0].mxu0
    %v794 = vadd.f32 0.0, %v793
    %v795 = vpop.f32.mrb[0].mxu0
    %v796 = vpop.f32.mrb[0].mxu0
    %v797 = vadd.f32 0.0, %v796
    %v798 = vpop.f32.mrb[0].mxu0
    %799 = vmatprep.mubr.bf16.mxu0 0
    %800 = vmatmul.mubr.bf16.gmra.mrb[0].mxu0 %v641
    %v801 = vpop.f32.mrb[0].mxu0
    %v802 = vadd.f32 0.0, %v801
    %v803 = vpop.f32.mrb[0].mxu0
    %v804 = vpop.f32.mrb[0].mxu0
    %v805 = vadd.f32 0.0, %v804
    %v806 = vpop.f32.mrb[0].mxu0
    %807 = vmatprep.mubr.bf16.mxu0 0
    %808 = vmatmul.mubr.bf16.gmra.mrb[0].mxu0 %v644
    %v809 = vpop.f32.mrb[0].mxu0
    %v810 = vadd.f32 0.0, %v809
    %v811 = vpop.f32.mrb[0].mxu0
    %v812 = vpop.f32.mrb[0].mxu0
    %v813 = vadd.f32 0.0, %v812
    %v814 = vpop.f32.mrb[0].mxu0
    %815 = vmatprep.mubr.bf16.mxu0 0
    %816 = vmatmul.mubr.bf16.gmra.mrb[0].mxu0 %v647
    %v817 = vpop.f32.mrb[0].mxu0
    %v818 = vadd.f32 0.0, %v817
    %v819 = vpop.f32.mrb[0].mxu0
    %v820 = vpop.f32.mrb[0].mxu0
    %v821 = vadd.f32 0.0, %v820
    %v822 = vpop.f32.mrb[0].mxu0
    %823 = vmatprep.mubr.bf16.mxu0 0
    %824 = vmatmul.mubr.bf16.gmra.mrb[0].mxu0 %v650
    %v825 = vpop.f32.mrb[0].mxu0
    %v826 = vadd.f32 0.0, %v825
    %v827 = vpop.f32.mrb[0].mxu0
    %v828 = vpop.f32.mrb[0].mxu0
    %v829 = vadd.f32 0.0, %v828
    %v830 = vpop.f32.mrb[0].mxu0
    %831 = vmatprep.mubr.bf16.mxu0 0
    %832 = vmatmul.mubr.bf16.gmra.mrb[0].mxu0 %v653
    %v833 = vpop.f32.mrb[0].mxu0
    %v834 = vadd.f32 0.0, %v833
    %v835 = vpop.f32.mrb[0].mxu0
    %v836 = vpop.f32.mrb[0].mxu0
    %v837 = vadd.f32 0.0, %v836
    %v838 = vpop.f32.mrb[0].mxu0
    %839 = vmatprep.mubr.bf16.mxu0 0
    %840 = vmatmul.mubr.bf16.gmra.mrb[0].mxu0 %v656
    %v841 = vpop.f32.mrb[0].mxu0
    %v842 = vadd.f32 0.0, %v841
    %v843 = vpop.f32.mrb[0].mxu0
    %v844 = vpop.f32.mrb[0].mxu0
    %v845 = vadd.f32 0.0, %v844
    %v846 = vpop.f32.mrb[0].mxu0
    %847 = vmatprep.mubr.bf16.mxu0 0
    %848 = vmatmul.mubr.bf16.gmra.mrb[0].mxu0 %v659
    %v849 = vpop.f32.mrb[0].mxu0
    %v850 = vadd.f32 0.0, %v849
    %v851 = vpop.f32.mrb[0].mxu0
    %v852 = vpop.f32.mrb[0].mxu0
    %v853 = vadd.f32 0.0, %v852
    %v854 = vpop.f32.mrb[0].mxu0
    %855 = vmatprep.mubr.bf16.mxu0 0
    %856 = vmatmul.mubr.bf16.gmra.mrb[0].mxu0 %v662
    %v857 = vpop.f32.mrb[0].mxu0
    %v858 = vadd.f32 0.0, %v857
    %v859 = vpop.f32.mrb[0].mxu0
    %v860 = vpop.f32.mrb[0].mxu0
    %v861 = vadd.f32 0.0, %v860
    %v862 = vpop.f32.mrb[0].mxu0
    %863 = vmatprep.mubr.bf16.mxu0 0
    %864 = vmatmul.mubr.bf16.gmra.mrb[0].mxu0 %v665
    %v865 = vpop.f32.mrb[0].mxu0
    %v866 = vadd.f32 0.0, %v865
    %v867 = vpop.f32.mrb[0].mxu0
    %v868 = vpop.f32.mrb[0].mxu0
    %v869 = vadd.f32 0.0, %v868
    %v870 = vpop.f32.mrb[0].mxu0
    %871 = vmatprep.mubr.bf16.mxu0 0
    %872 = vmatmul.mubr.bf16.gmra.mrb[0].mxu0 %v668
    %v873 = vpop.f32.mrb[0].mxu0
    %v874 = vadd.f32 0.0, %v873
    %v875 = vpop.f32.mrb[0].mxu0
    %v876 = vpop.f32.mrb[0].mxu0
    %v877 = vadd.f32 0.0, %v876
    %v878 = vpop.f32.mrb[0].mxu0
    %879 = vmatprep.mubr.bf16.mxu0 0
    %880 = vmatmul.mubr.bf16.gmra.mrb[0].mxu0 %v671
    %v881 = vpop.f32.mrb[0].mxu0
    %v882 = vadd.f32 0.0, %v881
    %v883 = vpop.f32.mrb[0].mxu0
    %v884 = vpop.f32.mrb[0].mxu0
    %v885 = vadd.f32 0.0, %v884
    %v886 = vpop.f32.mrb[0].mxu0
    %887 = vmatprep.mubr.bf16.mxu0 0
    %888 = vmatmul.mubr.bf16.gmra.mrb[0].mxu0 %v674
    %v889 = vpop.f32.mrb[0].mxu0
    %v890 = vadd.f32 0.0, %v889
    %v891 = vpop.f32.mrb[0].mxu0
    %v892 = vpop.f32.mrb[0].mxu0
    %v893 = vadd.f32 0.0, %v892
    %v894 = vpop.f32.mrb[0].mxu0
    %895 = vmatprep.mubr.bf16.mxu0 0
    %896 = vmatmul.mubr.bf16.gmra.mrb[0].mxu0 %v677
    %v897 = vpop.f32.mrb[0].mxu0
    %v898 = vadd.f32 0.0, %v897
    %v899 = vpop.f32.mrb[0].mxu0
    %v900 = vpop.f32.mrb[0].mxu0
    %v901 = vadd.f32 0.0, %v900
    %v902 = vpop.f32.mrb[0].mxu0
    %903 = vdwg.mxu0
    %v912 = vunpack.c.l.b16 %v52
    %v913 = vunpack.c.l.b16 %v53
    %v914 = vunpack.c.l.b16 %v54
    %v915 = vunpack.c.l.b16 %v55
    %v916 = vunpack.c.l.b16 %v56
    %v917 = vunpack.c.l.b16 %v57
    %v918 = vunpack.c.l.b16 %v58
    %v919 = vunpack.c.l.b16 %v59
    %v920 = vpack.c.b16 %v913, %v912
    %v921 = vpack.c.b16 %v915, %v914
    %v922 = vpack.c.b16 %v917, %v916
    %v923 = vpack.c.b16 %v919, %v918
    %928 = vmatprep.subr.bf16.mxu0 0
    %929 = vmatpush1.bf16.msra.mxu0 %v920
    %930 = vmatprep.subr.bf16.mxu0 0
    %931 = vmatpush1.bf16.msra.mxu0 %v921
    %932 = vmatprep.subr.bf16.mxu0 0
    %933 = vmatpush1.bf16.msra.mxu0 %v922
    %934 = vmatprep.subr.bf16.mxu0 0
    %935 = vmatpush1.bf16.msra.mxu0 %v923
    %936 = vmatprep.subr.bf16.mxu0 0
    %937 = vmatpush1.bf16.msra.mxu0 0
    %938 = vmatprep.subr.bf16.mxu0 0
    %939 = vmatpush1.bf16.msra.mxu0 0
    %940 = vmatprep.subr.bf16.mxu0 0
    %941 = vmatpush1.bf16.msra.mxu0 0
    %942 = vmatprep.subr.bf16.mxu0 0
    %943 = vmatpush1.bf16.msra.mxu0 0
    %944 = vmatprep.subr.bf16.mxu0 0
    %945 = vmatpush1.bf16.msra.mxu0 0
    %946 = vmatprep.subr.bf16.mxu0 0
    %947 = vmatpush1.bf16.msra.mxu0 0
    %948 = vmatprep.subr.bf16.mxu0 0
    %949 = vmatpush1.bf16.msra.mxu0 0
    %950 = vmatprep.subr.bf16.mxu0 0
    %951 = vmatpush1.bf16.msra.mxu0 0
    %952 = vmatprep.subr.bf16.mxu0 0
    %953 = vmatpush1.bf16.msra.mxu0 0
    %954 = vmatprep.subr.bf16.mxu0 0
    %955 = vmatpush1.bf16.msra.mxu0 0
    %956 = vmatprep.subr.bf16.mxu0 0
    %957 = vmatpush1.bf16.msra.mxu0 0
    %958 = vmatprep.subr.bf16.mxu0 0
    %959 = vmatpush1.bf16.msra.mxu0 0
    %960 = vmatprep.mubr.bf16.mxu0 0
    %961 = vmatmul.mubr.bf16.gmra.mrb[0].mxu0 %v608
    %v962 = vpop.f32.mrb[0].mxu0
    %v963 = vadd.f32 0.0, %v962
    %v964 = vpop.f32.mrb[0].mxu0
    %v965 = vpop.f32.mrb[0].mxu0
    %v966 = vadd.f32 0.0, %v965
    %v967 = vpop.f32.mrb[0].mxu0
    %968 = vmatprep.mubr.bf16.mxu0 0
    %969 = vmatmul.mubr.bf16.gmra.mrb[0].mxu0 %v611
    %v970 = vpop.f32.mrb[0].mxu0
    %v971 = vadd.f32 0.0, %v970
    %v972 = vpop.f32.mrb[0].mxu0
    %v973 = vpop.f32.mrb[0].mxu0
    %v974 = vadd.f32 0.0, %v973
    %v975 = vpop.f32.mrb[0].mxu0
    %976 = vmatprep.mubr.bf16.mxu0 0
    %977 = vmatmul.mubr.bf16.gmra.mrb[0].mxu0 %v614
    %v978 = vpop.f32.mrb[0].mxu0
    %v979 = vadd.f32 0.0, %v978
    %v980 = vpop.f32.mrb[0].mxu0
    %v981 = vpop.f32.mrb[0].mxu0
    %v982 = vadd.f32 0.0, %v981
    %v983 = vpop.f32.mrb[0].mxu0
    %984 = vmatprep.mubr.bf16.mxu0 0
    %985 = vmatmul.mubr.bf16.gmra.mrb[0].mxu0 %v617
    %v986 = vpop.f32.mrb[0].mxu0
    %v987 = vadd.f32 0.0, %v986
    %v988 = vpop.f32.mrb[0].mxu0
    %v989 = vpop.f32.mrb[0].mxu0
    %v990 = vadd.f32 0.0, %v989
    %v991 = vpop.f32.mrb[0].mxu0
    %992 = vmatprep.mubr.bf16.mxu0 0
    %993 = vmatmul.mubr.bf16.gmra.mrb[0].mxu0 %v620
    %v994 = vpop.f32.mrb[0].mxu0
    %v995 = vadd.f32 0.0, %v994
    %v996 = vpop.f32.mrb[0].mxu0
    %v997 = vpop.f32.mrb[0].mxu0
    %v998 = vadd.f32 0.0, %v997
    %v999 = vpop.f32.mrb[0].mxu0
    %1000 = vmatprep.mubr.bf16.mxu0 0
    %1001 = vmatmul.mubr.bf16.gmra.mrb[0].mxu0 %v623
    %v1002 = vpop.f32.mrb[0].mxu0
    %v1003 = vadd.f32 0.0, %v1002
    %v1004 = vpop.f32.mrb[0].mxu0
    %v1005 = vpop.f32.mrb[0].mxu0
    %v1006 = vadd.f32 0.0, %v1005
    %v1007 = vpop.f32.mrb[0].mxu0
    %1008 = vmatprep.mubr.bf16.mxu0 0
    %1009 = vmatmul.mubr.bf16.gmra.mrb[0].mxu0 %v626
    %v1010 = vpop.f32.mrb[0].mxu0
    %v1011 = vadd.f32 0.0, %v1010
    %v1012 = vpop.f32.mrb[0].mxu0
    %v1013 = vpop.f32.mrb[0].mxu0
    %v1014 = vadd.f32 0.0, %v1013
    %v1015 = vpop.f32.mrb[0].mxu0
    %1016 = vmatprep.mubr.bf16.mxu0 0
    %1017 = vmatmul.mubr.bf16.gmra.mrb[0].mxu0 %v629
    %v1018 = vpop.f32.mrb[0].mxu0
    %v1019 = vadd.f32 0.0, %v1018
    %v1020 = vpop.f32.mrb[0].mxu0
    %v1021 = vpop.f32.mrb[0].mxu0
    %v1022 = vadd.f32 0.0, %v1021
    %v1023 = vpop.f32.mrb[0].mxu0
    %1024 = vmatprep.mubr.bf16.mxu0 0
    %1025 = vmatmul.mubr.bf16.gmra.mrb[0].mxu0 %v632
    %v1026 = vpop.f32.mrb[0].mxu0
    %v1027 = vadd.f32 0.0, %v1026
    %v1028 = vpop.f32.mrb[0].mxu0
    %v1029 = vpop.f32.mrb[0].mxu0
    %v1030 = vadd.f32 0.0, %v1029
    %v1031 = vpop.f32.mrb[0].mxu0
    %1032 = vmatprep.mubr.bf16.mxu0 0
    %1033 = vmatmul.mubr.bf16.gmra.mrb[0].mxu0 %v635
    %v1034 = vpop.f32.mrb[0].mxu0
    %v1035 = vadd.f32 0.0, %v1034
    %v1036 = vpop.f32.mrb[0].mxu0
    %v1037 = vpop.f32.mrb[0].mxu0
    %v1038 = vadd.f32 0.0, %v1037
    %v1039 = vpop.f32.mrb[0].mxu0
    %1040 = vmatprep.mubr.bf16.mxu0 0
    %1041 = vmatmul.mubr.bf16.gmra.mrb[0].mxu0 %v638
    %v1042 = vpop.f32.mrb[0].mxu0
    %v1043 = vadd.f32 0.0, %v1042
    %v1044 = vpop.f32.mrb[0].mxu0
    %v1045 = vpop.f32.mrb[0].mxu0
    %v1046 = vadd.f32 0.0, %v1045
    %v1047 = vpop.f32.mrb[0].mxu0
    %1048 = vmatprep.mubr.bf16.mxu0 0
    %1049 = vmatmul.mubr.bf16.gmra.mrb[0].mxu0 %v641
    %v1050 = vpop.f32.mrb[0].mxu0
    %v1051 = vadd.f32 0.0, %v1050
    %v1052 = vpop.f32.mrb[0].mxu0
    %v1053 = vpop.f32.mrb[0].mxu0
    %v1054 = vadd.f32 0.0, %v1053
    %v1055 = vpop.f32.mrb[0].mxu0
    %1056 = vmatprep.mubr.bf16.mxu0 0
    %1057 = vmatmul.mubr.bf16.gmra.mrb[0].mxu0 %v644
    %v1058 = vpop.f32.mrb[0].mxu0
    %v1059 = vadd.f32 0.0, %v1058
    %v1060 = vpop.f32.mrb[0].mxu0
    %v1061 = vpop.f32.mrb[0].mxu0
    %v1062 = vadd.f32 0.0, %v1061
    %v1063 = vpop.f32.mrb[0].mxu0
    %1064 = vmatprep.mubr.bf16.mxu0 0
    %1065 = vmatmul.mubr.bf16.gmra.mrb[0].mxu0 %v647
    %v1066 = vpop.f32.mrb[0].mxu0
    %v1067 = vadd.f32 0.0, %v1066
    %v1068 = vpop.f32.mrb[0].mxu0
    %v1069 = vpop.f32.mrb[0].mxu0
    %v1070 = vadd.f32 0.0, %v1069
    %v1071 = vpop.f32.mrb[0].mxu0
    %1072 = vmatprep.mubr.bf16.mxu0 0
    %1073 = vmatmul.mubr.bf16.gmra.mrb[0].mxu0 %v650
    %v1074 = vpop.f32.mrb[0].mxu0
    %v1075 = vadd.f32 0.0, %v1074
    %v1076 = vpop.f32.mrb[0].mxu0
    %v1077 = vpop.f32.mrb[0].mxu0
    %v1078 = vadd.f32 0.0, %v1077
    %v1079 = vpop.f32.mrb[0].mxu0
    %1080 = vmatprep.mubr.bf16.mxu0 0
    %1081 = vmatmul.mubr.bf16.gmra.mrb[0].mxu0 %v653
    %v1082 = vpop.f32.mrb[0].mxu0
    %v1083 = vadd.f32 0.0, %v1082
    %v1084 = vpop.f32.mrb[0].mxu0
    %v1085 = vpop.f32.mrb[0].mxu0
    %v1086 = vadd.f32 0.0, %v1085
    %v1087 = vpop.f32.mrb[0].mxu0
    %1088 = vmatprep.mubr.bf16.mxu0 0
    %1089 = vmatmul.mubr.bf16.gmra.mrb[0].mxu0 %v656
    %v1090 = vpop.f32.mrb[0].mxu0
    %v1091 = vadd.f32 0.0, %v1090
    %v1092 = vpop.f32.mrb[0].mxu0
    %v1093 = vpop.f32.mrb[0].mxu0
    %v1094 = vadd.f32 0.0, %v1093
    %v1095 = vpop.f32.mrb[0].mxu0
    %1096 = vmatprep.mubr.bf16.mxu0 0
    %1097 = vmatmul.mubr.bf16.gmra.mrb[0].mxu0 %v659
    %v1098 = vpop.f32.mrb[0].mxu0
    %v1099 = vadd.f32 0.0, %v1098
    %v1100 = vpop.f32.mrb[0].mxu0
    %v1101 = vpop.f32.mrb[0].mxu0
    %v1102 = vadd.f32 0.0, %v1101
    %v1103 = vpop.f32.mrb[0].mxu0
    %1104 = vmatprep.mubr.bf16.mxu0 0
    %1105 = vmatmul.mubr.bf16.gmra.mrb[0].mxu0 %v662
    %v1106 = vpop.f32.mrb[0].mxu0
    %v1107 = vadd.f32 0.0, %v1106
    %v1108 = vpop.f32.mrb[0].mxu0
    %v1109 = vpop.f32.mrb[0].mxu0
    %v1110 = vadd.f32 0.0, %v1109
    %v1111 = vpop.f32.mrb[0].mxu0
    %1112 = vmatprep.mubr.bf16.mxu0 0
    %1113 = vmatmul.mubr.bf16.gmra.mrb[0].mxu0 %v665
    %v1114 = vpop.f32.mrb[0].mxu0
    %v1115 = vadd.f32 0.0, %v1114
    %v1116 = vpop.f32.mrb[0].mxu0
    %v1117 = vpop.f32.mrb[0].mxu0
    %v1118 = vadd.f32 0.0, %v1117
    %v1119 = vpop.f32.mrb[0].mxu0
    %1120 = vmatprep.mubr.bf16.mxu0 0
    %1121 = vmatmul.mubr.bf16.gmra.mrb[0].mxu0 %v668
    %v1122 = vpop.f32.mrb[0].mxu0
    %v1123 = vadd.f32 0.0, %v1122
    %v1124 = vpop.f32.mrb[0].mxu0
    %v1125 = vpop.f32.mrb[0].mxu0
    %v1126 = vadd.f32 0.0, %v1125
    %v1127 = vpop.f32.mrb[0].mxu0
    %1128 = vmatprep.mubr.bf16.mxu0 0
    %1129 = vmatmul.mubr.bf16.gmra.mrb[0].mxu0 %v671
    %v1130 = vpop.f32.mrb[0].mxu0
    %v1131 = vadd.f32 0.0, %v1130
    %v1132 = vpop.f32.mrb[0].mxu0
    %v1133 = vpop.f32.mrb[0].mxu0
    %v1134 = vadd.f32 0.0, %v1133
    %v1135 = vpop.f32.mrb[0].mxu0
    %1136 = vmatprep.mubr.bf16.mxu0 0
    %1137 = vmatmul.mubr.bf16.gmra.mrb[0].mxu0 %v674
    %v1138 = vpop.f32.mrb[0].mxu0
    %v1139 = vadd.f32 0.0, %v1138
    %v1140 = vpop.f32.mrb[0].mxu0
    %v1141 = vpop.f32.mrb[0].mxu0
    %v1142 = vadd.f32 0.0, %v1141
    %v1143 = vpop.f32.mrb[0].mxu0
    %1144 = vmatprep.mubr.bf16.mxu0 0
    %1145 = vmatmul.mubr.bf16.gmra.mrb[0].mxu0 %v677
    %v1146 = vpop.f32.mrb[0].mxu0
    %v1147 = vadd.f32 0.0, %v1146
    %v1148 = vpop.f32.mrb[0].mxu0
    %v1149 = vpop.f32.mrb[0].mxu0
    %v1150 = vadd.f32 0.0, %v1149
    %v1151 = vpop.f32.mrb[0].mxu0
    %1152 = vdwg.mxu0
    %v1153 = vld [vmem:[%s1] sm:$0xff]
    %v1154 = vld [vmem:[%s1 + $0x8] sm:$0xff]
    %v1155 = vlaneseq
    %v1156 = vshrl.u32 %v1155, 7
    %v1157 = vcombine.high %v1153, %v1153
    %v1159 = vunpack.c.l.s4 1966171168
    %v1160 = vunpack.c.0.s8 %v1159
    %v1161 = vlaneseq
    %v1162 = vshrl.u32 %v1161, 7
    %v1163 = vsub.s32 %v1160, %v1162
    %v1164 = vrot.slane %v1153, %v1163
    %v1166 = vunpack.c.l.s4 1966171168
    %v1167 = vunpack.c.0.s8 %v1166
    %v1168 = vlaneseq
    %v1169 = vshrl.u32 %v1168, 7
    %v1170 = vsub.s32 %v1167, %v1169
    %v1171 = vrot.slane %v1157, %v1170
    %v1172 = vcombine.high %v1164, %v1164
    %v1173 = vcombine.high %v1171, %v1171
    %v1175 = vunpack.c.l.s4 1966171168
    %v1176 = vunpack.c.0.s8 %v1175
    %v1177 = vlaneseq
    %v1178 = vshrl.u32 %v1177, 7
    %v1179 = vsub.s32 %v1176, %v1178
    %v1180 = vrot.slane %v1164, %v1179
    %v1182 = vunpack.c.l.s4 1966171168
    %v1183 = vunpack.c.0.s8 %v1182
    %v1184 = vlaneseq
    %v1185 = vshrl.u32 %v1184, 7
    %v1186 = vsub.s32 %v1183, %v1185
    %v1187 = vrot.slane %v1171, %v1186
    %v1189 = vunpack.c.l.s4 1966171168
    %v1190 = vunpack.c.0.s8 %v1189
    %v1191 = vlaneseq
    %v1192 = vshrl.u32 %v1191, 7
    %v1193 = vsub.s32 %v1190, %v1192
    %v1194 = vrot.slane %v1172, %v1193
    %v1196 = vunpack.c.l.s4 1966171168
    %v1197 = vunpack.c.0.s8 %v1196
    %v1198 = vlaneseq
    %v1199 = vshrl.u32 %v1198, 7
    %v1200 = vsub.s32 %v1197, %v1199
    %v1201 = vrot.slane %v1173, %v1200
    %v1202 = vcombine.high %v1180, %v1180
    %v1203 = vcombine.high %v1187, %v1187
    %v1204 = vcombine.high %v1194, %v1194
    %v1205 = vcombine.high %v1201, %v1201
    %v1206 = vcombine.high %v1154, %v1154
    %v1208 = vunpack.c.l.s4 1966171168
    %v1209 = vunpack.c.0.s8 %v1208
    %v1210 = vlaneseq
    %v1211 = vshrl.u32 %v1210, 7
    %v1212 = vsub.s32 %v1209, %v1211
    %v1213 = vrot.slane %v1154, %v1212
    %v1215 = vunpack.c.l.s4 1966171168
    %v1216 = vunpack.c.0.s8 %v1215
    %v1217 = vlaneseq
    %v1218 = vshrl.u32 %v1217, 7
    %v1219 = vsub.s32 %v1216, %v1218
    %v1220 = vrot.slane %v1206, %v1219
    %v1221 = vcombine.high %v1213, %v1213
    %v1222 = vcombine.high %v1220, %v1220
    %v1224 = vunpack.c.l.s4 1966171168
    %v1225 = vunpack.c.0.s8 %v1224
    %v1226 = vlaneseq
    %v1227 = vshrl.u32 %v1226, 7
    %v1228 = vsub.s32 %v1225, %v1227
    %v1229 = vrot.slane %v1213, %v1228
    %v1231 = vunpack.c.l.s4 1966171168
    %v1232 = vunpack.c.0.s8 %v1231
    %v1233 = vlaneseq
    %v1234 = vshrl.u32 %v1233, 7
    %v1235 = vsub.s32 %v1232, %v1234
    %v1236 = vrot.slane %v1220, %v1235
    %v1238 = vunpack.c.l.s4 1966171168
    %v1239 = vunpack.c.0.s8 %v1238
    %v1240 = vlaneseq
    %v1241 = vshrl.u32 %v1240, 7
    %v1242 = vsub.s32 %v1239, %v1241
    %v1243 = vrot.slane %v1221, %v1242
    %v1245 = vunpack.c.l.s4 1966171168
    %v1246 = vunpack.c.0.s8 %v1245
    %v1247 = vlaneseq
    %v1248 = vshrl.u32 %v1247, 7
    %v1249 = vsub.s32 %v1246, %v1248
    %v1250 = vrot.slane %v1222, %v1249
    %v1251 = vcombine.high %v1229, %v1229
    %v1252 = vcombine.high %v1236, %v1236
    %v1253 = vcombine.high %v1243, %v1243
    %v1254 = vcombine.high %v1250, %v1250
    %v1255 = vlaneseq
    %v1256 = vshrl.u32 %v1255, 7
    %v1257 = vsub.s32 0, %v1256
    %v1258 = vrot.slane %v1180, %v1257
    %v1259 = vlaneseq
    %v1260 = vshrl.u32 %v1259, 7
    %v1261 = vsub.s32 0, %v1260
    %v1262 = vrot.slane %v1194, %v1261
    %v1263 = vlaneseq
    %v1264 = vshrl.u32 %v1263, 7
    %v1265 = vsub.s32 0, %v1264
    %v1266 = vrot.slane %v1202, %v1265
    %v1267 = vlaneseq
    %v1268 = vshrl.u32 %v1267, 7
    %v1269 = vsub.s32 0, %v1268
    %v1270 = vrot.slane %v1204, %v1269
    %v1271 = vlaneseq
    %v1272 = vshrl.u32 %v1271, 7
    %v1273 = vsub.s32 0, %v1272
    %v1274 = vrot.slane %v1187, %v1273
    %v1275 = vlaneseq
    %v1276 = vshrl.u32 %v1275, 7
    %v1277 = vsub.s32 0, %v1276
    %v1278 = vrot.slane %v1201, %v1277
    %v1279 = vlaneseq
    %v1280 = vshrl.u32 %v1279, 7
    %v1281 = vsub.s32 0, %v1280
    %v1282 = vrot.slane %v1203, %v1281
    %v1283 = vlaneseq
    %v1284 = vshrl.u32 %v1283, 7
    %v1285 = vsub.s32 0, %v1284
    %v1286 = vrot.slane %v1205, %v1285
    %v1287 = vlaneseq
    %v1288 = vshrl.u32 %v1287, 7
    %v1289 = vsub.s32 0, %v1288
    %v1290 = vrot.slane %v1229, %v1289
    %v1291 = vlaneseq
    %v1292 = vshrl.u32 %v1291, 7
    %v1293 = vsub.s32 0, %v1292
    %v1294 = vrot.slane %v1243, %v1293
    %v1295 = vlaneseq
    %v1296 = vshrl.u32 %v1295, 7
    %v1297 = vsub.s32 0, %v1296
    %v1298 = vrot.slane %v1251, %v1297
    %v1299 = vlaneseq
    %v1300 = vshrl.u32 %v1299, 7
    %v1301 = vsub.s32 0, %v1300
    %v1302 = vrot.slane %v1253, %v1301
    %v1303 = vlaneseq
    %v1304 = vshrl.u32 %v1303, 7
    %v1305 = vsub.s32 0, %v1304
    %v1306 = vrot.slane %v1236, %v1305
    %v1307 = vlaneseq
    %v1308 = vshrl.u32 %v1307, 7
    %v1309 = vsub.s32 0, %v1308
    %v1310 = vrot.slane %v1250, %v1309
    %v1311 = vlaneseq
    %v1312 = vshrl.u32 %v1311, 7
    %v1313 = vsub.s32 0, %v1312
    %v1314 = vrot.slane %v1252, %v1313
    %v1315 = vlaneseq
    %v1316 = vshrl.u32 %v1315, 7
    %v1317 = vsub.s32 0, %v1316
    %v1318 = vrot.slane %v1254, %v1317
    %vm1319 = vcmp.lt.s32.totalorder %v1156, %v1258
    %vm1320 = vcmp.lt.s32.totalorder %v1156, %v1262
    %vm1321 = vcmp.lt.s32.totalorder %v1156, %v1266
    %vm1322 = vcmp.lt.s32.totalorder %v1156, %v1270
    %vm1323 = vcmp.lt.s32.totalorder %v1156, %v1274
    %vm1324 = vcmp.lt.s32.totalorder %v1156, %v1278
    %vm1325 = vcmp.lt.s32.totalorder %v1156, %v1282
    %vm1326 = vcmp.lt.s32.totalorder %v1156, %v1286
    %vm1327 = vcmp.lt.s32.totalorder %v1156, %v1290
    %vm1328 = vcmp.lt.s32.totalorder %v1156, %v1294
    %vm1329 = vcmp.lt.s32.totalorder %v1156, %v1298
    %vm1330 = vcmp.lt.s32.totalorder %v1156, %v1302
    %vm1331 = vcmp.lt.s32.totalorder %v1156, %v1306
    %vm1332 = vcmp.lt.s32.totalorder %v1156, %v1310
    %vm1333 = vcmp.lt.s32.totalorder %v1156, %v1314
    %vm1334 = vcmp.lt.s32.totalorder %v1156, %v1318
    %v1335 = vsel %vm1319, %v963, -inf
    %v1336 = vsel %vm1320, %v974, -inf
    %v1337 = vsel %vm1321, %v987, -inf
    %v1338 = vsel %vm1322, %v998, -inf
    %v1339 = vsel %vm1323, %v1011, -inf
    %v1340 = vsel %vm1324, %v1022, -inf
    %v1341 = vsel %vm1325, %v1035, -inf
    %v1342 = vsel %vm1326, %v1046, -inf
    %v1343 = vsel %vm1327, %v1059, -inf
    %v1344 = vsel %vm1328, %v1070, -inf
    %v1345 = vsel %vm1329, %v1083, -inf
    %v1346 = vsel %vm1330, %v1094, -inf
    %v1347 = vsel %vm1331, %v1107, -inf
    %v1348 = vsel %vm1332, %v1118, -inf
    %v1349 = vsel %vm1333, %v1131, -inf
    %v1350 = vsel %vm1334, %v1142, -inf
    %vm1351 = vcmask 7168
    %v1352 = vsel %vm1351, %v1335, -inf
    %v1353 = vrot.slane %v1352, 4
    %v1354 = vmax.f32 %v1352, %v1353
    %v1355 = vrot.slane %v1354, 2
    %v1356 = vmax.f32 %v1354, %v1355
    %v1357 = vrot.slane %v1356, 1
    %v1358 = vmax.f32 %v1356, %v1357
    %v1359 = vsel %vm1351, %v1336, -inf
    %v1360 = vrot.slane %v1359, 4
    %v1361 = vmax.f32 %v1359, %v1360
    %v1362 = vrot.slane %v1361, 2
    %v1363 = vmax.f32 %v1361, %v1362
    %v1364 = vrot.slane %v1363, 1
    %v1365 = vmax.f32 %v1363, %v1364
    %v1366 = vsel %vm1351, %v1337, -inf
    %v1367 = vrot.slane %v1366, 4
    %v1368 = vmax.f32 %v1366, %v1367
    %v1369 = vrot.slane %v1368, 2
    %v1370 = vmax.f32 %v1368, %v1369
    %v1371 = vrot.slane %v1370, 1
    %v1372 = vmax.f32 %v1370, %v1371
    %v1373 = vsel %vm1351, %v1338, -inf
    %v1374 = vrot.slane %v1373, 4
    %v1375 = vmax.f32 %v1373, %v1374
    %v1376 = vrot.slane %v1375, 2
    %v1377 = vmax.f32 %v1375, %v1376
    %v1378 = vrot.slane %v1377, 1
    %v1379 = vmax.f32 %v1377, %v1378
    %v1380 = vsel %vm1351, %v1339, -inf
    %v1381 = vrot.slane %v1380, 4
    %v1382 = vmax.f32 %v1380, %v1381
    %v1383 = vrot.slane %v1382, 2
    %v1384 = vmax.f32 %v1382, %v1383
    %v1385 = vrot.slane %v1384, 1
    %v1386 = vmax.f32 %v1384, %v1385
    %v1387 = vsel %vm1351, %v1340, -inf
    %v1388 = vrot.slane %v1387, 4
    %v1389 = vmax.f32 %v1387, %v1388
    %v1390 = vrot.slane %v1389, 2
    %v1391 = vmax.f32 %v1389, %v1390
    %v1392 = vrot.slane %v1391, 1
    %v1393 = vmax.f32 %v1391, %v1392
    %v1394 = vsel %vm1351, %v1341, -inf
    %v1395 = vrot.slane %v1394, 4
    %v1396 = vmax.f32 %v1394, %v1395
    %v1397 = vrot.slane %v1396, 2
    %v1398 = vmax.f32 %v1396, %v1397
    %v1399 = vrot.slane %v1398, 1
    %v1400 = vmax.f32 %v1398, %v1399
    %v1401 = vsel %vm1351, %v1342, -inf
    %v1402 = vrot.slane %v1401, 4
    %v1403 = vmax.f32 %v1401, %v1402
    %v1404 = vrot.slane %v1403, 2
    %v1405 = vmax.f32 %v1403, %v1404
    %v1406 = vrot.slane %v1405, 1
    %v1407 = vmax.f32 %v1405, %v1406
    %v1408 = vsel %vm1351, %v1343, -inf
    %v1409 = vrot.slane %v1408, 4
    %v1410 = vmax.f32 %v1408, %v1409
    %v1411 = vrot.slane %v1410, 2
    %v1412 = vmax.f32 %v1410, %v1411
    %v1413 = vrot.slane %v1412, 1
    %v1414 = vmax.f32 %v1412, %v1413
    %v1415 = vsel %vm1351, %v1344, -inf
    %v1416 = vrot.slane %v1415, 4
    %v1417 = vmax.f32 %v1415, %v1416
    %v1418 = vrot.slane %v1417, 2
    %v1419 = vmax.f32 %v1417, %v1418
    %v1420 = vrot.slane %v1419, 1
    %v1421 = vmax.f32 %v1419, %v1420
    %v1422 = vsel %vm1351, %v1345, -inf
    %v1423 = vrot.slane %v1422, 4
    %v1424 = vmax.f32 %v1422, %v1423
    %v1425 = vrot.slane %v1424, 2
    %v1426 = vmax.f32 %v1424, %v1425
    %v1427 = vrot.slane %v1426, 1
    %v1428 = vmax.f32 %v1426, %v1427
    %v1429 = vsel %vm1351, %v1346, -inf
    %v1430 = vrot.slane %v1429, 4
    %v1431 = vmax.f32 %v1429, %v1430
    %v1432 = vrot.slane %v1431, 2
    %v1433 = vmax.f32 %v1431, %v1432
    %v1434 = vrot.slane %v1433, 1
    %v1435 = vmax.f32 %v1433, %v1434
    %v1436 = vsel %vm1351, %v1347, -inf
    %v1437 = vrot.slane %v1436, 4
    %v1438 = vmax.f32 %v1436, %v1437
    %v1439 = vrot.slane %v1438, 2
    %v1440 = vmax.f32 %v1438, %v1439
    %v1441 = vrot.slane %v1440, 1
    %v1442 = vmax.f32 %v1440, %v1441
    %v1443 = vsel %vm1351, %v1348, -inf
    %v1444 = vrot.slane %v1443, 4
    %v1445 = vmax.f32 %v1443, %v1444
    %v1446 = vrot.slane %v1445, 2
    %v1447 = vmax.f32 %v1445, %v1446
    %v1448 = vrot.slane %v1447, 1
    %v1449 = vmax.f32 %v1447, %v1448
    %v1450 = vsel %vm1351, %v1349, -inf
    %v1451 = vrot.slane %v1450, 4
    %v1452 = vmax.f32 %v1450, %v1451
    %v1453 = vrot.slane %v1452, 2
    %v1454 = vmax.f32 %v1452, %v1453
    %v1455 = vrot.slane %v1454, 1
    %v1456 = vmax.f32 %v1454, %v1455
    %v1457 = vsel %vm1351, %v1350, -inf
    %v1458 = vrot.slane %v1457, 4
    %v1459 = vmax.f32 %v1457, %v1458
    %v1460 = vrot.slane %v1459, 2
    %v1461 = vmax.f32 %v1459, %v1460
    %v1462 = vrot.slane %v1461, 1
    %v1463 = vmax.f32 %v1461, %v1462
    %v1464 = vsub.f32 %v1335, %v1358
    %v1465 = vsub.f32 %v1336, %v1365
    %v1466 = vsub.f32 %v1337, %v1372
    %v1467 = vsub.f32 %v1338, %v1379
    %v1468 = vsub.f32 %v1339, %v1386
    %v1469 = vsub.f32 %v1340, %v1393
    %v1470 = vsub.f32 %v1341, %v1400
    %v1471 = vsub.f32 %v1342, %v1407
    %v1472 = vsub.f32 %v1343, %v1414
    %v1473 = vsub.f32 %v1344, %v1421
    %v1474 = vsub.f32 %v1345, %v1428
    %v1475 = vsub.f32 %v1346, %v1435
    %v1476 = vsub.f32 %v1347, %v1442
    %v1477 = vsub.f32 %v1348, %v1449
    %v1478 = vsub.f32 %v1349, %v1456
    %v1479 = vsub.f32 %v1350, %v1463
    %v1480 = vmul.f32 %v1464, 1.442695
    %v1481 = vpow.pop %v1480
    %v1482 = vmul.f32 %v1465, 1.442695
    %v1483 = vpow.pop %v1482
    %v1484 = vmul.f32 %v1466, 1.442695
    %v1485 = vpow.pop %v1484
    %v1486 = vmul.f32 %v1467, 1.442695
    %v1487 = vpow.pop %v1486
    %v1488 = vmul.f32 %v1468, 1.442695
    %v1489 = vpow.pop %v1488
    %v1490 = vmul.f32 %v1469, 1.442695
    %v1491 = vpow.pop %v1490
    %v1492 = vmul.f32 %v1470, 1.442695
    %v1493 = vpow.pop %v1492
    %v1494 = vmul.f32 %v1471, 1.442695
    %v1495 = vpow.pop %v1494
    %v1496 = vmul.f32 %v1472, 1.442695
    %v1497 = vpow.pop %v1496
    %v1498 = vmul.f32 %v1473, 1.442695
    %v1499 = vpow.pop %v1498
    %v1500 = vmul.f32 %v1474, 1.442695
    %v1501 = vpow.pop %v1500
    %v1502 = vmul.f32 %v1475, 1.442695
    %v1503 = vpow.pop %v1502
    %v1504 = vmul.f32 %v1476, 1.442695
    %v1505 = vpow.pop %v1504
    %v1506 = vmul.f32 %v1477, 1.442695
    %v1507 = vpow.pop %v1506
    %v1508 = vmul.f32 %v1478, 1.442695
    %v1509 = vpow.pop %v1508
    %v1510 = vmul.f32 %v1479, 1.442695
    %v1511 = vpow.pop %v1510
    %v1512 = vsel %vm1351, %v1481, 0.0
    %v1513 = vrot.slane %v1512, 4
    %v1514 = vadd.f32 %v1512, %v1513
    %v1515 = vrot.slane %v1514, 2
    %v1516 = vadd.f32 %v1514, %v1515
    %v1517 = vrot.slane %v1516, 1
    %v1518 = vadd.f32 %v1516, %v1517
    %v1519 = vsel %vm1351, %v1483, 0.0
    %v1520 = vrot.slane %v1519, 4
    %v1521 = vadd.f32 %v1519, %v1520
    %v1522 = vrot.slane %v1521, 2
    %v1523 = vadd.f32 %v1521, %v1522
    %v1524 = vrot.slane %v1523, 1
    %v1525 = vadd.f32 %v1523, %v1524
    %v1526 = vsel %vm1351, %v1485, 0.0
    %v1527 = vrot.slane %v1526, 4
    %v1528 = vadd.f32 %v1526, %v1527
    %v1529 = vrot.slane %v1528, 2
    %v1530 = vadd.f32 %v1528, %v1529
    %v1531 = vrot.slane %v1530, 1
    %v1532 = vadd.f32 %v1530, %v1531
    %v1533 = vsel %vm1351, %v1487, 0.0
    %v1534 = vrot.slane %v1533, 4
    %v1535 = vadd.f32 %v1533, %v1534
    %v1536 = vrot.slane %v1535, 2
    %v1537 = vadd.f32 %v1535, %v1536
    %v1538 = vrot.slane %v1537, 1
    %v1539 = vadd.f32 %v1537, %v1538
    %v1540 = vsel %vm1351, %v1489, 0.0
    %v1541 = vrot.slane %v1540, 4
    %v1542 = vadd.f32 %v1540, %v1541
    %v1543 = vrot.slane %v1542, 2
    %v1544 = vadd.f32 %v1542, %v1543
    %v1545 = vrot.slane %v1544, 1
    %v1546 = vadd.f32 %v1544, %v1545
    %v1547 = vsel %vm1351, %v1491, 0.0
    %v1548 = vrot.slane %v1547, 4
    %v1549 = vadd.f32 %v1547, %v1548
    %v1550 = vrot.slane %v1549, 2
    %v1551 = vadd.f32 %v1549, %v1550
    %v1552 = vrot.slane %v1551, 1
    %v1553 = vadd.f32 %v1551, %v1552
    %v1554 = vsel %vm1351, %v1493, 0.0
    %v1555 = vrot.slane %v1554, 4
    %v1556 = vadd.f32 %v1554, %v1555
    %v1557 = vrot.slane %v1556, 2
    %v1558 = vadd.f32 %v1556, %v1557
    %v1559 = vrot.slane %v1558, 1
    %v1560 = vadd.f32 %v1558, %v1559
    %v1561 = vsel %vm1351, %v1495, 0.0
    %v1562 = vrot.slane %v1561, 4
    %v1563 = vadd.f32 %v1561, %v1562
    %v1564 = vrot.slane %v1563, 2
    %v1565 = vadd.f32 %v1563, %v1564
    %v1566 = vrot.slane %v1565, 1
    %v1567 = vadd.f32 %v1565, %v1566
    %v1568 = vsel %vm1351, %v1497, 0.0
    %v1569 = vrot.slane %v1568, 4
    %v1570 = vadd.f32 %v1568, %v1569
    %v1571 = vrot.slane %v1570, 2
    %v1572 = vadd.f32 %v1570, %v1571
    %v1573 = vrot.slane %v1572, 1
    %v1574 = vadd.f32 %v1572, %v1573
    %v1575 = vsel %vm1351, %v1499, 0.0
    %v1576 = vrot.slane %v1575, 4
    %v1577 = vadd.f32 %v1575, %v1576
    %v1578 = vrot.slane %v1577, 2
    %v1579 = vadd.f32 %v1577, %v1578
    %v1580 = vrot.slane %v1579, 1
    %v1581 = vadd.f32 %v1579, %v1580
    %v1582 = vsel %vm1351, %v1501, 0.0
    %v1583 = vrot.slane %v1582, 4
    %v1584 = vadd.f32 %v1582, %v1583
    %v1585 = vrot.slane %v1584, 2
    %v1586 = vadd.f32 %v1584, %v1585
    %v1587 = vrot.slane %v1586, 1
    %v1588 = vadd.f32 %v1586, %v1587
    %v1589 = vsel %vm1351, %v1503, 0.0
    %v1590 = vrot.slane %v1589, 4
    %v1591 = vadd.f32 %v1589, %v1590
    %v1592 = vrot.slane %v1591, 2
    %v1593 = vadd.f32 %v1591, %v1592
    %v1594 = vrot.slane %v1593, 1
    %v1595 = vadd.f32 %v1593, %v1594
    %v1596 = vsel %vm1351, %v1505, 0.0
    %v1597 = vrot.slane %v1596, 4
    %v1598 = vadd.f32 %v1596, %v1597
    %v1599 = vrot.slane %v1598, 2
    %v1600 = vadd.f32 %v1598, %v1599
    %v1601 = vrot.slane %v1600, 1
    %v1602 = vadd.f32 %v1600, %v1601
    %v1603 = vsel %vm1351, %v1507, 0.0
    %v1604 = vrot.slane %v1603, 4
    %v1605 = vadd.f32 %v1603, %v1604
    %v1606 = vrot.slane %v1605, 2
    %v1607 = vadd.f32 %v1605, %v1606
    %v1608 = vrot.slane %v1607, 1
    %v1609 = vadd.f32 %v1607, %v1608
    %v1610 = vsel %vm1351, %v1509, 0.0
    %v1611 = vrot.slane %v1610, 4
    %v1612 = vadd.f32 %v1610, %v1611
    %v1613 = vrot.slane %v1612, 2
    %v1614 = vadd.f32 %v1612, %v1613
    %v1615 = vrot.slane %v1614, 1
    %v1616 = vadd.f32 %v1614, %v1615
    %v1617 = vsel %vm1351, %v1511, 0.0
    %v1618 = vrot.slane %v1617, 4
    %v1619 = vadd.f32 %v1617, %v1618
    %v1620 = vrot.slane %v1619, 2
    %v1621 = vadd.f32 %v1619, %v1620
    %v1622 = vrot.slane %v1621, 1
    %v1623 = vadd.f32 %v1621, %v1622
    %v1624 = vrcp.pop %v1518
    %v1625 = vrcp.pop %v1525
    %v1626 = vrcp.pop %v1532
    %v1627 = vrcp.pop %v1539
    %v1628 = vrcp.pop %v1546
    %v1629 = vrcp.pop %v1553
    %v1630 = vrcp.pop %v1560
    %v1631 = vrcp.pop %v1567
    %v1632 = vrcp.pop %v1574
    %v1633 = vrcp.pop %v1581
    %v1634 = vrcp.pop %v1588
    %v1635 = vrcp.pop %v1595
    %v1636 = vrcp.pop %v1602
    %v1637 = vrcp.pop %v1609
    %v1638 = vrcp.pop %v1616
    %v1639 = vrcp.pop %v1623
    %v1640 = vmul.f32 %v1481, %v1624
    %v1641 = vmul.f32 %v1483, %v1625
    %v1642 = vmul.f32 %v1485, %v1626
    %v1643 = vmul.f32 %v1487, %v1627
    %v1644 = vmul.f32 %v1489, %v1628
    %v1645 = vmul.f32 %v1491, %v1629
    %v1646 = vmul.f32 %v1493, %v1630
    %v1647 = vmul.f32 %v1495, %v1631
    %v1648 = vmul.f32 %v1497, %v1632
    %v1649 = vmul.f32 %v1499, %v1633
    %v1650 = vmul.f32 %v1501, %v1634
    %v1651 = vmul.f32 %v1503, %v1635
    %v1652 = vmul.f32 %v1505, %v1636
    %v1653 = vmul.f32 %v1507, %v1637
    %v1654 = vmul.f32 %v1509, %v1638
    %v1655 = vmul.f32 %v1511, %v1639
    %1657 = vset.pattern.permute.xlu0 0
    %1658 = vperm.xlu0 %1657, %v1640
    %v1659 = vpop.permute.xlu0 %1658
    %1662 = vset.pattern.permute.xlu0 0
    %1663 = vperm.xlu0 %1662, %v1641
    %v1664 = vpop.permute.xlu0 %1663
    %1667 = vset.pattern.permute.xlu0 0
    %1668 = vperm.xlu0 %1667, %v1642
    %v1669 = vpop.permute.xlu0 %1668
    %1672 = vset.pattern.permute.xlu0 0
    %1673 = vperm.xlu0 %1672, %v1643
    %v1674 = vpop.permute.xlu0 %1673
    %1677 = vset.pattern.permute.xlu0 0
    %1678 = vperm.xlu0 %1677, %v1644
    %v1679 = vpop.permute.xlu0 %1678
    %1682 = vset.pattern.permute.xlu0 0
    %1683 = vperm.xlu0 %1682, %v1645
    %v1684 = vpop.permute.xlu0 %1683
    %1687 = vset.pattern.permute.xlu0 0
    %1688 = vperm.xlu0 %1687, %v1646
    %v1689 = vpop.permute.xlu0 %1688
    %1692 = vset.pattern.permute.xlu0 0
    %1693 = vperm.xlu0 %1692, %v1647
    %v1694 = vpop.permute.xlu0 %1693
    %1697 = vset.pattern.permute.xlu0 0
    %1698 = vperm.xlu0 %1697, %v1648
    %v1699 = vpop.permute.xlu0 %1698
    %1702 = vset.pattern.permute.xlu0 0
    %1703 = vperm.xlu0 %1702, %v1649
    %v1704 = vpop.permute.xlu0 %1703
    %1707 = vset.pattern.permute.xlu0 0
    %1708 = vperm.xlu0 %1707, %v1650
    %v1709 = vpop.permute.xlu0 %1708
    %1712 = vset.pattern.permute.xlu0 0
    %1713 = vperm.xlu0 %1712, %v1651
    %v1714 = vpop.permute.xlu0 %1713
    %1717 = vset.pattern.permute.xlu0 0
    %1718 = vperm.xlu0 %1717, %v1652
    %v1719 = vpop.permute.xlu0 %1718
    %1722 = vset.pattern.permute.xlu0 0
    %1723 = vperm.xlu0 %1722, %v1653
    %v1724 = vpop.permute.xlu0 %1723
    %1727 = vset.pattern.permute.xlu0 0
    %1728 = vperm.xlu0 %1727, %v1654
    %v1729 = vpop.permute.xlu0 %1728
    %1732 = vset.pattern.permute.xlu0 0
    %1733 = vperm.xlu0 %1732, %v1655
    %v1734 = vpop.permute.xlu0 %1733
    %v1736 = vmul.f32 %v1659, %v714
    %v1737 = vmul.f32 %v1664, %v725
    %v1738 = vmul.f32 %v1669, %v738
    %v1739 = vmul.f32 %v1674, %v749
    %v1740 = vmul.f32 %v1679, %v762
    %v1741 = vmul.f32 %v1684, %v773
    %v1742 = vmul.f32 %v1689, %v786
    %v1743 = vmul.f32 %v1694, %v797
    %v1744 = vmul.f32 %v1699, %v810
    %v1745 = vmul.f32 %v1704, %v821
    %v1746 = vmul.f32 %v1709, %v834
    %v1747 = vmul.f32 %v1714, %v845
    %v1748 = vmul.f32 %v1719, %v858
    %v1749 = vmul.f32 %v1724, %v869
    %v1750 = vmul.f32 %v1729, %v882
    %v1751 = vmul.f32 %v1734, %v893
    %vm1752 = vcmask 261120
    %v1753 = vsel %vm1752, %v1736, 0.0
    %v1754 = vrot.slane %v1753, 4
    %v1755 = vadd.f32 %v1753, %v1754
    %v1756 = vrot.slane %v1755, 2
    %v1757 = vadd.f32 %v1755, %v1756
    %v1758 = vrot.slane %v1757, 1
    %v1759 = vadd.f32 %v1757, %v1758
    %v1760 = vsel %vm1752, %v1737, 0.0
    %v1761 = vrot.slane %v1760, 4
    %v1762 = vadd.f32 %v1760, %v1761
    %v1763 = vrot.slane %v1762, 2
    %v1764 = vadd.f32 %v1762, %v1763
    %v1765 = vrot.slane %v1764, 1
    %v1766 = vadd.f32 %v1764, %v1765
    %v1767 = vsel %vm1752, %v1738, 0.0
    %v1768 = vrot.slane %v1767, 4
    %v1769 = vadd.f32 %v1767, %v1768
    %v1770 = vrot.slane %v1769, 2
    %v1771 = vadd.f32 %v1769, %v1770
    %v1772 = vrot.slane %v1771, 1
    %v1773 = vadd.f32 %v1771, %v1772
    %v1774 = vsel %vm1752, %v1739, 0.0
    %v1775 = vrot.slane %v1774, 4
    %v1776 = vadd.f32 %v1774, %v1775
    %v1777 = vrot.slane %v1776, 2
    %v1778 = vadd.f32 %v1776, %v1777
    %v1779 = vrot.slane %v1778, 1
    %v1780 = vadd.f32 %v1778, %v1779
    %v1781 = vsel %vm1752, %v1740, 0.0
    %v1782 = vrot.slane %v1781, 4
    %v1783 = vadd.f32 %v1781, %v1782
    %v1784 = vrot.slane %v1783, 2
    %v1785 = vadd.f32 %v1783, %v1784
    %v1786 = vrot.slane %v1785, 1
    %v1787 = vadd.f32 %v1785, %v1786
    %v1788 = vsel %vm1752, %v1741, 0.0
    %v1789 = vrot.slane %v1788, 4
    %v1790 = vadd.f32 %v1788, %v1789
    %v1791 = vrot.slane %v1790, 2
    %v1792 = vadd.f32 %v1790, %v1791
    %v1793 = vrot.slane %v1792, 1
    %v1794 = vadd.f32 %v1792, %v1793
    %v1795 = vsel %vm1752, %v1742, 0.0
    %v1796 = vrot.slane %v1795, 4
    %v1797 = vadd.f32 %v1795, %v1796
    %v1798 = vrot.slane %v1797, 2
    %v1799 = vadd.f32 %v1797, %v1798
    %v1800 = vrot.slane %v1799, 1
    %v1801 = vadd.f32 %v1799, %v1800
    %v1802 = vsel %vm1752, %v1743, 0.0
    %v1803 = vrot.slane %v1802, 4
    %v1804 = vadd.f32 %v1802, %v1803
    %v1805 = vrot.slane %v1804, 2
    %v1806 = vadd.f32 %v1804, %v1805
    %v1807 = vrot.slane %v1806, 1
    %v1808 = vadd.f32 %v1806, %v1807
    %v1809 = vsel %vm1752, %v1744, 0.0
    %v1810 = vrot.slane %v1809, 4
    %v1811 = vadd.f32 %v1809, %v1810
    %v1812 = vrot.slane %v1811, 2
    %v1813 = vadd.f32 %v1811, %v1812
    %v1814 = vrot.slane %v1813, 1
    %v1815 = vadd.f32 %v1813, %v1814
    %v1816 = vsel %vm1752, %v1745, 0.0
    %v1817 = vrot.slane %v1816, 4
    %v1818 = vadd.f32 %v1816, %v1817
    %v1819 = vrot.slane %v1818, 2
    %v1820 = vadd.f32 %v1818, %v1819
    %v1821 = vrot.slane %v1820, 1
    %v1822 = vadd.f32 %v1820, %v1821
    %v1823 = vsel %vm1752, %v1746, 0.0
    %v1824 = vrot.slane %v1823, 4
    %v1825 = vadd.f32 %v1823, %v1824
    %v1826 = vrot.slane %v1825, 2
    %v1827 = vadd.f32 %v1825, %v1826
    %v1828 = vrot.slane %v1827, 1
    %v1829 = vadd.f32 %v1827, %v1828
    %v1830 = vsel %vm1752, %v1747, 0.0
    %v1831 = vrot.slane %v1830, 4
    %v1832 = vadd.f32 %v1830, %v1831
    %v1833 = vrot.slane %v1832, 2
    %v1834 = vadd.f32 %v1832, %v1833
    %v1835 = vrot.slane %v1834, 1
    %v1836 = vadd.f32 %v1834, %v1835
    %v1837 = vsel %vm1752, %v1748, 0.0
    %v1838 = vrot.slane %v1837, 4
    %v1839 = vadd.f32 %v1837, %v1838
    %v1840 = vrot.slane %v1839, 2
    %v1841 = vadd.f32 %v1839, %v1840
    %v1842 = vrot.slane %v1841, 1
    %v1843 = vadd.f32 %v1841, %v1842
    %v1844 = vsel %vm1752, %v1749, 0.0
    %v1845 = vrot.slane %v1844, 4
    %v1846 = vadd.f32 %v1844, %v1845
    %v1847 = vrot.slane %v1846, 2
    %v1848 = vadd.f32 %v1846, %v1847
    %v1849 = vrot.slane %v1848, 1
    %v1850 = vadd.f32 %v1848, %v1849
    %v1851 = vsel %vm1752, %v1750, 0.0
    %v1852 = vrot.slane %v1851, 4
    %v1853 = vadd.f32 %v1851, %v1852
    %v1854 = vrot.slane %v1853, 2
    %v1855 = vadd.f32 %v1853, %v1854
    %v1856 = vrot.slane %v1855, 1
    %v1857 = vadd.f32 %v1855, %v1856
    %v1858 = vsel %vm1752, %v1751, 0.0
    %v1859 = vrot.slane %v1858, 4
    %v1860 = vadd.f32 %v1858, %v1859
    %v1861 = vrot.slane %v1860, 2
    %v1862 = vadd.f32 %v1860, %v1861
    %v1863 = vrot.slane %v1862, 1
    %v1864 = vadd.f32 %v1862, %v1863
    %v1865 = vld [vmem:[%s2] sm:$0xff]
    %v1866 = vld [vmem:[%s2 + $0x8] sm:$0xff]
    %v1867 = vadd.s32 %v1156, 8
    %v1868 = vcombine.high %v1865, %v1865
    %v1870 = vunpack.c.l.s4 1966171168
    %v1871 = vunpack.c.0.s8 %v1870
    %v1872 = vlaneseq
    %v1873 = vshrl.u32 %v1872, 7
    %v1874 = vsub.s32 %v1871, %v1873
    %v1875 = vrot.slane %v1865, %v1874
    %v1877 = vunpack.c.l.s4 1966171168
    %v1878 = vunpack.c.0.s8 %v1877
    %v1879 = vlaneseq
    %v1880 = vshrl.u32 %v1879, 7
    %v1881 = vsub.s32 %v1878, %v1880
    %v1882 = vrot.slane %v1868, %v1881
    %v1883 = vcombine.high %v1875, %v1875
    %v1884 = vcombine.high %v1882, %v1882
    %v1886 = vunpack.c.l.s4 1966171168
    %v1887 = vunpack.c.0.s8 %v1886
    %v1888 = vlaneseq
    %v1889 = vshrl.u32 %v1888, 7
    %v1890 = vsub.s32 %v1887, %v1889
    %v1891 = vrot.slane %v1875, %v1890
    %v1893 = vunpack.c.l.s4 1966171168
    %v1894 = vunpack.c.0.s8 %v1893
    %v1895 = vlaneseq
    %v1896 = vshrl.u32 %v1895, 7
    %v1897 = vsub.s32 %v1894, %v1896
    %v1898 = vrot.slane %v1882, %v1897
    %v1900 = vunpack.c.l.s4 1966171168
    %v1901 = vunpack.c.0.s8 %v1900
    %v1902 = vlaneseq
    %v1903 = vshrl.u32 %v1902, 7
    %v1904 = vsub.s32 %v1901, %v1903
    %v1905 = vrot.slane %v1883, %v1904
    %v1907 = vunpack.c.l.s4 1966171168
    %v1908 = vunpack.c.0.s8 %v1907
    %v1909 = vlaneseq
    %v1910 = vshrl.u32 %v1909, 7
    %v1911 = vsub.s32 %v1908, %v1910
    %v1912 = vrot.slane %v1884, %v1911
    %v1913 = vcombine.high %v1891, %v1891
    %v1914 = vcombine.high %v1898, %v1898
    %v1915 = vcombine.high %v1905, %v1905
    %v1916 = vcombine.high %v1912, %v1912
    %v1917 = vcombine.high %v1866, %v1866
    %v1919 = vunpack.c.l.s4 1966171168
    %v1920 = vunpack.c.0.s8 %v1919
    %v1921 = vlaneseq
    %v1922 = vshrl.u32 %v1921, 7
    %v1923 = vsub.s32 %v1920, %v1922
    %v1924 = vrot.slane %v1866, %v1923
    %v1926 = vunpack.c.l.s4 1966171168
    %v1927 = vunpack.c.0.s8 %v1926
    %v1928 = vlaneseq
    %v1929 = vshrl.u32 %v1928, 7
    %v1930 = vsub.s32 %v1927, %v1929
    %v1931 = vrot.slane %v1917, %v1930
    %v1932 = vcombine.high %v1924, %v1924
    %v1933 = vcombine.high %v1931, %v1931
    %v1935 = vunpack.c.l.s4 1966171168
    %v1936 = vunpack.c.0.s8 %v1935
    %v1937 = vlaneseq
    %v1938 = vshrl.u32 %v1937, 7
    %v1939 = vsub.s32 %v1936, %v1938
    %v1940 = vrot.slane %v1924, %v1939
    %v1942 = vunpack.c.l.s4 1966171168
    %v1943 = vunpack.c.0.s8 %v1942
    %v1944 = vlaneseq
    %v1945 = vshrl.u32 %v1944, 7
    %v1946 = vsub.s32 %v1943, %v1945
    %v1947 = vrot.slane %v1931, %v1946
    %v1949 = vunpack.c.l.s4 1966171168
    %v1950 = vunpack.c.0.s8 %v1949
    %v1951 = vlaneseq
    %v1952 = vshrl.u32 %v1951, 7
    %v1953 = vsub.s32 %v1950, %v1952
    %v1954 = vrot.slane %v1932, %v1953
    %v1956 = vunpack.c.l.s4 1966171168
    %v1957 = vunpack.c.0.s8 %v1956
    %v1958 = vlaneseq
    %v1959 = vshrl.u32 %v1958, 7
    %v1960 = vsub.s32 %v1957, %v1959
    %v1961 = vrot.slane %v1933, %v1960
    %v1962 = vcombine.high %v1940, %v1940
    %v1963 = vcombine.high %v1947, %v1947
    %v1964 = vcombine.high %v1954, %v1954
    %v1965 = vcombine.high %v1961, %v1961
    %v1966 = vlaneseq
    %v1967 = vshrl.u32 %v1966, 7
    %v1968 = vsub.s32 0, %v1967
    %v1969 = vrot.slane %v1891, %v1968
    %v1970 = vlaneseq
    %v1971 = vshrl.u32 %v1970, 7
    %v1972 = vsub.s32 0, %v1971
    %v1973 = vrot.slane %v1905, %v1972
    %v1974 = vlaneseq
    %v1975 = vshrl.u32 %v1974, 7
    %v1976 = vsub.s32 0, %v1975
    %v1977 = vrot.slane %v1913, %v1976
    %v1978 = vlaneseq
    %v1979 = vshrl.u32 %v1978, 7
    %v1980 = vsub.s32 0, %v1979
    %v1981 = vrot.slane %v1915, %v1980
    %v1982 = vlaneseq
    %v1983 = vshrl.u32 %v1982, 7
    %v1984 = vsub.s32 0, %v1983
    %v1985 = vrot.slane %v1898, %v1984
    %v1986 = vlaneseq
    %v1987 = vshrl.u32 %v1986, 7
    %v1988 = vsub.s32 0, %v1987
    %v1989 = vrot.slane %v1912, %v1988
    %v1990 = vlaneseq
    %v1991 = vshrl.u32 %v1990, 7
    %v1992 = vsub.s32 0, %v1991
    %v1993 = vrot.slane %v1914, %v1992
    %v1994 = vlaneseq
    %v1995 = vshrl.u32 %v1994, 7
    %v1996 = vsub.s32 0, %v1995
    %v1997 = vrot.slane %v1916, %v1996
    %v1998 = vlaneseq
    %v1999 = vshrl.u32 %v1998, 7
    %v2000 = vsub.s32 0, %v1999
    %v2001 = vrot.slane %v1940, %v2000
    %v2002 = vlaneseq
    %v2003 = vshrl.u32 %v2002, 7
    %v2004 = vsub.s32 0, %v2003
    %v2005 = vrot.slane %v1954, %v2004
    %v2006 = vlaneseq
    %v2007 = vshrl.u32 %v2006, 7
    %v2008 = vsub.s32 0, %v2007
    %v2009 = vrot.slane %v1962, %v2008
    %v2010 = vlaneseq
    %v2011 = vshrl.u32 %v2010, 7
    %v2012 = vsub.s32 0, %v2011
    %v2013 = vrot.slane %v1964, %v2012
    %v2014 = vlaneseq
    %v2015 = vshrl.u32 %v2014, 7
    %v2016 = vsub.s32 0, %v2015
    %v2017 = vrot.slane %v1947, %v2016
    %v2018 = vlaneseq
    %v2019 = vshrl.u32 %v2018, 7
    %v2020 = vsub.s32 0, %v2019
    %v2021 = vrot.slane %v1961, %v2020
    %v2022 = vlaneseq
    %v2023 = vshrl.u32 %v2022, 7
    %v2024 = vsub.s32 0, %v2023
    %v2025 = vrot.slane %v1963, %v2024
    %v2026 = vlaneseq
    %v2027 = vshrl.u32 %v2026, 7
    %v2028 = vsub.s32 0, %v2027
    %v2029 = vrot.slane %v1965, %v2028
    %vm2030 = vcmp.lt.s32.totalorder %v1156, %v1969
    %vm2031 = vcmp.lt.s32.totalorder %v1867, %v1969
    %vm2032 = vcmp.lt.s32.totalorder %v1156, %v1973
    %vm2033 = vcmp.lt.s32.totalorder %v1867, %v1973
    %vm2034 = vcmp.lt.s32.totalorder %v1156, %v1977
    %vm2035 = vcmp.lt.s32.totalorder %v1867, %v1977
    %vm2036 = vcmp.lt.s32.totalorder %v1156, %v1981
    %vm2037 = vcmp.lt.s32.totalorder %v1867, %v1981
    %vm2038 = vcmp.lt.s32.totalorder %v1156, %v1985
    %vm2039 = vcmp.lt.s32.totalorder %v1867, %v1985
    %vm2040 = vcmp.lt.s32.totalorder %v1156, %v1989
    %vm2041 = vcmp.lt.s32.totalorder %v1867, %v1989
    %vm2042 = vcmp.lt.s32.totalorder %v1156, %v1993
    %vm2043 = vcmp.lt.s32.totalorder %v1867, %v1993
    %vm2044 = vcmp.lt.s32.totalorder %v1156, %v1997
    %vm2045 = vcmp.lt.s32.totalorder %v1867, %v1997
    %vm2046 = vcmp.lt.s32.totalorder %v1156, %v2001
    %vm2047 = vcmp.lt.s32.totalorder %v1867, %v2001
    %vm2048 = vcmp.lt.s32.totalorder %v1156, %v2005
    %vm2049 = vcmp.lt.s32.totalorder %v1867, %v2005
    %vm2050 = vcmp.lt.s32.totalorder %v1156, %v2009
    %vm2051 = vcmp.lt.s32.totalorder %v1867, %v2009
    %vm2052 = vcmp.lt.s32.totalorder %v1156, %v2013
    %vm2053 = vcmp.lt.s32.totalorder %v1867, %v2013
    %vm2054 = vcmp.lt.s32.totalorder %v1156, %v2017
    %vm2055 = vcmp.lt.s32.totalorder %v1867, %v2017
    %vm2056 = vcmp.lt.s32.totalorder %v1156, %v2021
    %vm2057 = vcmp.lt.s32.totalorder %v1867, %v2021
    %vm2058 = vcmp.lt.s32.totalorder %v1156, %v2025
    %vm2059 = vcmp.lt.s32.totalorder %v1867, %v2025
    %vm2060 = vcmp.lt.s32.totalorder %v1156, %v2029
    %vm2061 = vcmp.lt.s32.totalorder %v1867, %v2029
    %v2062 = vsel %vm2030, %v966, -inf
    %v2063 = vsel %vm2031, %v971, -inf
    %v2064 = vsel %vm2032, %v979, -inf
    %v2065 = vsel %vm2033, %v982, -inf
    %v2066 = vsel %vm2034, %v990, -inf
    %v2067 = vsel %vm2035, %v995, -inf
    %v2068 = vsel %vm2036, %v1003, -inf
    %v2069 = vsel %vm2037, %v1006, -inf
    %v2070 = vsel %vm2038, %v1014, -inf
    %v2071 = vsel %vm2039, %v1019, -inf
    %v2072 = vsel %vm2040, %v1027, -inf
    %v2073 = vsel %vm2041, %v1030, -inf
    %v2074 = vsel %vm2042, %v1038, -inf
    %v2075 = vsel %vm2043, %v1043, -inf
    %v2076 = vsel %vm2044, %v1051, -inf
    %v2077 = vsel %vm2045, %v1054, -inf
    %v2078 = vsel %vm2046, %v1062, -inf
    %v2079 = vsel %vm2047, %v1067, -inf
    %v2080 = vsel %vm2048, %v1075, -inf
    %v2081 = vsel %vm2049, %v1078, -inf
    %v2082 = vsel %vm2050, %v1086, -inf
    %v2083 = vsel %vm2051, %v1091, -inf
    %v2084 = vsel %vm2052, %v1099, -inf
    %v2085 = vsel %vm2053, %v1102, -inf
    %v2086 = vsel %vm2054, %v1110, -inf
    %v2087 = vsel %vm2055, %v1115, -inf
    %v2088 = vsel %vm2056, %v1123, -inf
    %v2089 = vsel %vm2057, %v1126, -inf
    %v2090 = vsel %vm2058, %v1134, -inf
    %v2091 = vsel %vm2059, %v1139, -inf
    %v2092 = vsel %vm2060, %v1147, -inf
    %v2093 = vsel %vm2061, %v1150, -inf
    %v2094 = vsel %vm1351, %v2062, -inf
    %v2095 = vsel %vm1351, %v2063, -inf
    %v2096 = vmax.f32 %v2094, %v2095
    %v2097 = vrot.slane %v2096, 4
    %v2098 = vmax.f32 %v2096, %v2097
    %v2099 = vrot.slane %v2098, 2
    %v2100 = vmax.f32 %v2098, %v2099
    %v2101 = vrot.slane %v2100, 1
    %v2102 = vmax.f32 %v2100, %v2101
    %v2103 = vsel %vm1351, %v2064, -inf
    %v2104 = vsel %vm1351, %v2065, -inf
    %v2105 = vmax.f32 %v2103, %v2104
    %v2106 = vrot.slane %v2105, 4
    %v2107 = vmax.f32 %v2105, %v2106
    %v2108 = vrot.slane %v2107, 2
    %v2109 = vmax.f32 %v2107, %v2108
    %v2110 = vrot.slane %v2109, 1
    %v2111 = vmax.f32 %v2109, %v2110
    %v2112 = vsel %vm1351, %v2066, -inf
    %v2113 = vsel %vm1351, %v2067, -inf
    %v2114 = vmax.f32 %v2112, %v2113
    %v2115 = vrot.slane %v2114, 4
    %v2116 = vmax.f32 %v2114, %v2115
    %v2117 = vrot.slane %v2116, 2
    %v2118 = vmax.f32 %v2116, %v2117
    %v2119 = vrot.slane %v2118, 1
    %v2120 = vmax.f32 %v2118, %v2119
    %v2121 = vsel %vm1351, %v2068, -inf
    %v2122 = vsel %vm1351, %v2069, -inf
    %v2123 = vmax.f32 %v2121, %v2122
    %v2124 = vrot.slane %v2123, 4
    %v2125 = vmax.f32 %v2123, %v2124
    %v2126 = vrot.slane %v2125, 2
    %v2127 = vmax.f32 %v2125, %v2126
    %v2128 = vrot.slane %v2127, 1
    %v2129 = vmax.f32 %v2127, %v2128
    %v2130 = vsel %vm1351, %v2070, -inf
    %v2131 = vsel %vm1351, %v2071, -inf
    %v2132 = vmax.f32 %v2130, %v2131
    %v2133 = vrot.slane %v2132, 4
    %v2134 = vmax.f32 %v2132, %v2133
    %v2135 = vrot.slane %v2134, 2
    %v2136 = vmax.f32 %v2134, %v2135
    %v2137 = vrot.slane %v2136, 1
    %v2138 = vmax.f32 %v2136, %v2137
    %v2139 = vsel %vm1351, %v2072, -inf
    %v2140 = vsel %vm1351, %v2073, -inf
    %v2141 = vmax.f32 %v2139, %v2140
    %v2142 = vrot.slane %v2141, 4
    %v2143 = vmax.f32 %v2141, %v2142
    %v2144 = vrot.slane %v2143, 2
    %v2145 = vmax.f32 %v2143, %v2144
    %v2146 = vrot.slane %v2145, 1
    %v2147 = vmax.f32 %v2145, %v2146
    %v2148 = vsel %vm1351, %v2074, -inf
    %v2149 = vsel %vm1351, %v2075, -inf
    %v2150 = vmax.f32 %v2148, %v2149
    %v2151 = vrot.slane %v2150, 4
    %v2152 = vmax.f32 %v2150, %v2151
    %v2153 = vrot.slane %v2152, 2
    %v2154 = vmax.f32 %v2152, %v2153
    %v2155 = vrot.slane %v2154, 1
    %v2156 = vmax.f32 %v2154, %v2155
    %v2157 = vsel %vm1351, %v2076, -inf
    %v2158 = vsel %vm1351, %v2077, -inf
    %v2159 = vmax.f32 %v2157, %v2158
    %v2160 = vrot.slane %v2159, 4
    %v2161 = vmax.f32 %v2159, %v2160
    %v2162 = vrot.slane %v2161, 2
    %v2163 = vmax.f32 %v2161, %v2162
    %v2164 = vrot.slane %v2163, 1
    %v2165 = vmax.f32 %v2163, %v2164
    %v2166 = vsel %vm1351, %v2078, -inf
    %v2167 = vsel %vm1351, %v2079, -inf
    %v2168 = vmax.f32 %v2166, %v2167
    %v2169 = vrot.slane %v2168, 4
    %v2170 = vmax.f32 %v2168, %v2169
    %v2171 = vrot.slane %v2170, 2
    %v2172 = vmax.f32 %v2170, %v2171
    %v2173 = vrot.slane %v2172, 1
    %v2174 = vmax.f32 %v2172, %v2173
    %v2175 = vsel %vm1351, %v2080, -inf
    %v2176 = vsel %vm1351, %v2081, -inf
    %v2177 = vmax.f32 %v2175, %v2176
    %v2178 = vrot.slane %v2177, 4
    %v2179 = vmax.f32 %v2177, %v2178
    %v2180 = vrot.slane %v2179, 2
    %v2181 = vmax.f32 %v2179, %v2180
    %v2182 = vrot.slane %v2181, 1
    %v2183 = vmax.f32 %v2181, %v2182
    %v2184 = vsel %vm1351, %v2082, -inf
    %v2185 = vsel %vm1351, %v2083, -inf
    %v2186 = vmax.f32 %v2184, %v2185
    %v2187 = vrot.slane %v2186, 4
    %v2188 = vmax.f32 %v2186, %v2187
    %v2189 = vrot.slane %v2188, 2
    %v2190 = vmax.f32 %v2188, %v2189
    %v2191 = vrot.slane %v2190, 1
    %v2192 = vmax.f32 %v2190, %v2191
    %v2193 = vsel %vm1351, %v2084, -inf
    %v2194 = vsel %vm1351, %v2085, -inf
    %v2195 = vmax.f32 %v2193, %v2194
    %v2196 = vrot.slane %v2195, 4
    %v2197 = vmax.f32 %v2195, %v2196
    %v2198 = vrot.slane %v2197, 2
    %v2199 = vmax.f32 %v2197, %v2198
    %v2200 = vrot.slane %v2199, 1
    %v2201 = vmax.f32 %v2199, %v2200
    %v2202 = vsel %vm1351, %v2086, -inf
    %v2203 = vsel %vm1351, %v2087, -inf
    %v2204 = vmax.f32 %v2202, %v2203
    %v2205 = vrot.slane %v2204, 4
    %v2206 = vmax.f32 %v2204, %v2205
    %v2207 = vrot.slane %v2206, 2
    %v2208 = vmax.f32 %v2206, %v2207
    %v2209 = vrot.slane %v2208, 1
    %v2210 = vmax.f32 %v2208, %v2209
    %v2211 = vsel %vm1351, %v2088, -inf
    %v2212 = vsel %vm1351, %v2089, -inf
    %v2213 = vmax.f32 %v2211, %v2212
    %v2214 = vrot.slane %v2213, 4
    %v2215 = vmax.f32 %v2213, %v2214
    %v2216 = vrot.slane %v2215, 2
    %v2217 = vmax.f32 %v2215, %v2216
    %v2218 = vrot.slane %v2217, 1
    %v2219 = vmax.f32 %v2217, %v2218
    %v2220 = vsel %vm1351, %v2090, -inf
    %v2221 = vsel %vm1351, %v2091, -inf
    %v2222 = vmax.f32 %v2220, %v2221
    %v2223 = vrot.slane %v2222, 4
    %v2224 = vmax.f32 %v2222, %v2223
    %v2225 = vrot.slane %v2224, 2
    %v2226 = vmax.f32 %v2224, %v2225
    %v2227 = vrot.slane %v2226, 1
    %v2228 = vmax.f32 %v2226, %v2227
    %v2229 = vsel %vm1351, %v2092, -inf
    %v2230 = vsel %vm1351, %v2093, -inf
    %v2231 = vmax.f32 %v2229, %v2230
    %v2232 = vrot.slane %v2231, 4
    %v2233 = vmax.f32 %v2231, %v2232
    %v2234 = vrot.slane %v2233, 2
    %v2235 = vmax.f32 %v2233, %v2234
    %v2236 = vrot.slane %v2235, 1
    %v2237 = vmax.f32 %v2235, %v2236
    %v2238 = vsub.f32 %v2062, %v2102
    %v2239 = vsub.f32 %v2063, %v2102
    %v2240 = vsub.f32 %v2064, %v2111
    %v2241 = vsub.f32 %v2065, %v2111
    %v2242 = vsub.f32 %v2066, %v2120
    %v2243 = vsub.f32 %v2067, %v2120
    %v2244 = vsub.f32 %v2068, %v2129
    %v2245 = vsub.f32 %v2069, %v2129
    %v2246 = vsub.f32 %v2070, %v2138
    %v2247 = vsub.f32 %v2071, %v2138
    %v2248 = vsub.f32 %v2072, %v2147
    %v2249 = vsub.f32 %v2073, %v2147
    %v2250 = vsub.f32 %v2074, %v2156
    %v2251 = vsub.f32 %v2075, %v2156
    %v2252 = vsub.f32 %v2076, %v2165
    %v2253 = vsub.f32 %v2077, %v2165
    %v2254 = vsub.f32 %v2078, %v2174
    %v2255 = vsub.f32 %v2079, %v2174
    %v2256 = vsub.f32 %v2080, %v2183
    %v2257 = vsub.f32 %v2081, %v2183
    %v2258 = vsub.f32 %v2082, %v2192
    %v2259 = vsub.f32 %v2083, %v2192
    %v2260 = vsub.f32 %v2084, %v2201
    %v2261 = vsub.f32 %v2085, %v2201
    %v2262 = vsub.f32 %v2086, %v2210
    %v2263 = vsub.f32 %v2087, %v2210
    %v2264 = vsub.f32 %v2088, %v2219
    %v2265 = vsub.f32 %v2089, %v2219
    %v2266 = vsub.f32 %v2090, %v2228
    %v2267 = vsub.f32 %v2091, %v2228
    %v2268 = vsub.f32 %v2092, %v2237
    %v2269 = vsub.f32 %v2093, %v2237
    %v2270 = vmul.f32 %v2238, 1.442695
    %v2271 = vpow.pop %v2270
    %v2272 = vmul.f32 %v2239, 1.442695
    %v2273 = vpow.pop %v2272
    %v2274 = vmul.f32 %v2240, 1.442695
    %v2275 = vpow.pop %v2274
    %v2276 = vmul.f32 %v2241, 1.442695
    %v2277 = vpow.pop %v2276
    %v2278 = vmul.f32 %v2242, 1.442695
    %v2279 = vpow.pop %v2278
    %v2280 = vmul.f32 %v2243, 1.442695
    %v2281 = vpow.pop %v2280
    %v2282 = vmul.f32 %v2244, 1.442695
    %v2283 = vpow.pop %v2282
    %v2284 = vmul.f32 %v2245, 1.442695
    %v2285 = vpow.pop %v2284
    %v2286 = vmul.f32 %v2246, 1.442695
    %v2287 = vpow.pop %v2286
    %v2288 = vmul.f32 %v2247, 1.442695
    %v2289 = vpow.pop %v2288
    %v2290 = vmul.f32 %v2248, 1.442695
    %v2291 = vpow.pop %v2290
    %v2292 = vmul.f32 %v2249, 1.442695
    %v2293 = vpow.pop %v2292
    %v2294 = vmul.f32 %v2250, 1.442695
    %v2295 = vpow.pop %v2294
    %v2296 = vmul.f32 %v2251, 1.442695
    %v2297 = vpow.pop %v2296
    %v2298 = vmul.f32 %v2252, 1.442695
    %v2299 = vpow.pop %v2298
    %v2300 = vmul.f32 %v2253, 1.442695
    %v2301 = vpow.pop %v2300
    %v2302 = vmul.f32 %v2254, 1.442695
    %v2303 = vpow.pop %v2302
    %v2304 = vmul.f32 %v2255, 1.442695
    %v2305 = vpow.pop %v2304
    %v2306 = vmul.f32 %v2256, 1.442695
    %v2307 = vpow.pop %v2306
    %v2308 = vmul.f32 %v2257, 1.442695
    %v2309 = vpow.pop %v2308
    %v2310 = vmul.f32 %v2258, 1.442695
    %v2311 = vpow.pop %v2310
    %v2312 = vmul.f32 %v2259, 1.442695
    %v2313 = vpow.pop %v2312
    %v2314 = vmul.f32 %v2260, 1.442695
    %v2315 = vpow.pop %v2314
    %v2316 = vmul.f32 %v2261, 1.442695
    %v2317 = vpow.pop %v2316
    %v2318 = vmul.f32 %v2262, 1.442695
    %v2319 = vpow.pop %v2318
    %v2320 = vmul.f32 %v2263, 1.442695
    %v2321 = vpow.pop %v2320
    %v2322 = vmul.f32 %v2264, 1.442695
    %v2323 = vpow.pop %v2322
    %v2324 = vmul.f32 %v2265, 1.442695
    %v2325 = vpow.pop %v2324
    %v2326 = vmul.f32 %v2266, 1.442695
    %v2327 = vpow.pop %v2326
    %v2328 = vmul.f32 %v2267, 1.442695
    %v2329 = vpow.pop %v2328
    %v2330 = vmul.f32 %v2268, 1.442695
    %v2331 = vpow.pop %v2330
    %v2332 = vmul.f32 %v2269, 1.442695
    %v2333 = vpow.pop %v2332
    %v2334 = vsel %vm1351, %v2271, 0.0
    %v2335 = vsel %vm1351, %v2273, 0.0
    %v2336 = vadd.f32 %v2334, %v2335
    %v2337 = vrot.slane %v2336, 4
    %v2338 = vadd.f32 %v2336, %v2337
    %v2339 = vrot.slane %v2338, 2
    %v2340 = vadd.f32 %v2338, %v2339
    %v2341 = vrot.slane %v2340, 1
    %v2342 = vadd.f32 %v2340, %v2341
    %v2343 = vsel %vm1351, %v2275, 0.0
    %v2344 = vsel %vm1351, %v2277, 0.0
    %v2345 = vadd.f32 %v2343, %v2344
    %v2346 = vrot.slane %v2345, 4
    %v2347 = vadd.f32 %v2345, %v2346
    %v2348 = vrot.slane %v2347, 2
    %v2349 = vadd.f32 %v2347, %v2348
    %v2350 = vrot.slane %v2349, 1
    %v2351 = vadd.f32 %v2349, %v2350
    %v2352 = vsel %vm1351, %v2279, 0.0
    %v2353 = vsel %vm1351, %v2281, 0.0
    %v2354 = vadd.f32 %v2352, %v2353
    %v2355 = vrot.slane %v2354, 4
    %v2356 = vadd.f32 %v2354, %v2355
    %v2357 = vrot.slane %v2356, 2
    %v2358 = vadd.f32 %v2356, %v2357
    %v2359 = vrot.slane %v2358, 1
    %v2360 = vadd.f32 %v2358, %v2359
    %v2361 = vsel %vm1351, %v2283, 0.0
    %v2362 = vsel %vm1351, %v2285, 0.0
    %v2363 = vadd.f32 %v2361, %v2362
    %v2364 = vrot.slane %v2363, 4
    %v2365 = vadd.f32 %v2363, %v2364
    %v2366 = vrot.slane %v2365, 2
    %v2367 = vadd.f32 %v2365, %v2366
    %v2368 = vrot.slane %v2367, 1
    %v2369 = vadd.f32 %v2367, %v2368
    %v2370 = vsel %vm1351, %v2287, 0.0
    %v2371 = vsel %vm1351, %v2289, 0.0
    %v2372 = vadd.f32 %v2370, %v2371
    %v2373 = vrot.slane %v2372, 4
    %v2374 = vadd.f32 %v2372, %v2373
    %v2375 = vrot.slane %v2374, 2
    %v2376 = vadd.f32 %v2374, %v2375
    %v2377 = vrot.slane %v2376, 1
    %v2378 = vadd.f32 %v2376, %v2377
    %v2379 = vsel %vm1351, %v2291, 0.0
    %v2380 = vsel %vm1351, %v2293, 0.0
    %v2381 = vadd.f32 %v2379, %v2380
    %v2382 = vrot.slane %v2381, 4
    %v2383 = vadd.f32 %v2381, %v2382
    %v2384 = vrot.slane %v2383, 2
    %v2385 = vadd.f32 %v2383, %v2384
    %v2386 = vrot.slane %v2385, 1
    %v2387 = vadd.f32 %v2385, %v2386
    %v2388 = vsel %vm1351, %v2295, 0.0
    %v2389 = vsel %vm1351, %v2297, 0.0
    %v2390 = vadd.f32 %v2388, %v2389
    %v2391 = vrot.slane %v2390, 4
    %v2392 = vadd.f32 %v2390, %v2391
    %v2393 = vrot.slane %v2392, 2
    %v2394 = vadd.f32 %v2392, %v2393
    %v2395 = vrot.slane %v2394, 1
    %v2396 = vadd.f32 %v2394, %v2395
    %v2397 = vsel %vm1351, %v2299, 0.0
    %v2398 = vsel %vm1351, %v2301, 0.0
    %v2399 = vadd.f32 %v2397, %v2398
    %v2400 = vrot.slane %v2399, 4
    %v2401 = vadd.f32 %v2399, %v2400
    %v2402 = vrot.slane %v2401, 2
    %v2403 = vadd.f32 %v2401, %v2402
    %v2404 = vrot.slane %v2403, 1
    %v2405 = vadd.f32 %v2403, %v2404
    %v2406 = vsel %vm1351, %v2303, 0.0
    %v2407 = vsel %vm1351, %v2305, 0.0
    %v2408 = vadd.f32 %v2406, %v2407
    %v2409 = vrot.slane %v2408, 4
    %v2410 = vadd.f32 %v2408, %v2409
    %v2411 = vrot.slane %v2410, 2
    %v2412 = vadd.f32 %v2410, %v2411
    %v2413 = vrot.slane %v2412, 1
    %v2414 = vadd.f32 %v2412, %v2413
    %v2415 = vsel %vm1351, %v2307, 0.0
    %v2416 = vsel %vm1351, %v2309, 0.0
    %v2417 = vadd.f32 %v2415, %v2416
    %v2418 = vrot.slane %v2417, 4
    %v2419 = vadd.f32 %v2417, %v2418
    %v2420 = vrot.slane %v2419, 2
    %v2421 = vadd.f32 %v2419, %v2420
    %v2422 = vrot.slane %v2421, 1
    %v2423 = vadd.f32 %v2421, %v2422
    %v2424 = vsel %vm1351, %v2311, 0.0
    %v2425 = vsel %vm1351, %v2313, 0.0
    %v2426 = vadd.f32 %v2424, %v2425
    %v2427 = vrot.slane %v2426, 4
    %v2428 = vadd.f32 %v2426, %v2427
    %v2429 = vrot.slane %v2428, 2
    %v2430 = vadd.f32 %v2428, %v2429
    %v2431 = vrot.slane %v2430, 1
    %v2432 = vadd.f32 %v2430, %v2431
    %v2433 = vsel %vm1351, %v2315, 0.0
    %v2434 = vsel %vm1351, %v2317, 0.0
    %v2435 = vadd.f32 %v2433, %v2434
    %v2436 = vrot.slane %v2435, 4
    %v2437 = vadd.f32 %v2435, %v2436
    %v2438 = vrot.slane %v2437, 2
    %v2439 = vadd.f32 %v2437, %v2438
    %v2440 = vrot.slane %v2439, 1
    %v2441 = vadd.f32 %v2439, %v2440
    %v2442 = vsel %vm1351, %v2319, 0.0
    %v2443 = vsel %vm1351, %v2321, 0.0
    %v2444 = vadd.f32 %v2442, %v2443
    %v2445 = vrot.slane %v2444, 4
    %v2446 = vadd.f32 %v2444, %v2445
    %v2447 = vrot.slane %v2446, 2
    %v2448 = vadd.f32 %v2446, %v2447
    %v2449 = vrot.slane %v2448, 1
    %v2450 = vadd.f32 %v2448, %v2449
    %v2451 = vsel %vm1351, %v2323, 0.0
    %v2452 = vsel %vm1351, %v2325, 0.0
    %v2453 = vadd.f32 %v2451, %v2452
    %v2454 = vrot.slane %v2453, 4
    %v2455 = vadd.f32 %v2453, %v2454
    %v2456 = vrot.slane %v2455, 2
    %v2457 = vadd.f32 %v2455, %v2456
    %v2458 = vrot.slane %v2457, 1
    %v2459 = vadd.f32 %v2457, %v2458
    %v2460 = vsel %vm1351, %v2327, 0.0
    %v2461 = vsel %vm1351, %v2329, 0.0
    %v2462 = vadd.f32 %v2460, %v2461
    %v2463 = vrot.slane %v2462, 4
    %v2464 = vadd.f32 %v2462, %v2463
    %v2465 = vrot.slane %v2464, 2
    %v2466 = vadd.f32 %v2464, %v2465
    %v2467 = vrot.slane %v2466, 1
    %v2468 = vadd.f32 %v2466, %v2467
    %v2469 = vsel %vm1351, %v2331, 0.0
    %v2470 = vsel %vm1351, %v2333, 0.0
    %v2471 = vadd.f32 %v2469, %v2470
    %v2472 = vrot.slane %v2471, 4
    %v2473 = vadd.f32 %v2471, %v2472
    %v2474 = vrot.slane %v2473, 2
    %v2475 = vadd.f32 %v2473, %v2474
    %v2476 = vrot.slane %v2475, 1
    %v2477 = vadd.f32 %v2475, %v2476
    %v2478 = vrcp.pop %v2342
    %v2479 = vrcp.pop %v2351
    %v2480 = vrcp.pop %v2360
    %v2481 = vrcp.pop %v2369
    %v2482 = vrcp.pop %v2378
    %v2483 = vrcp.pop %v2387
    %v2484 = vrcp.pop %v2396
    %v2485 = vrcp.pop %v2405
    %v2486 = vrcp.pop %v2414
    %v2487 = vrcp.pop %v2423
    %v2488 = vrcp.pop %v2432
    %v2489 = vrcp.pop %v2441
    %v2490 = vrcp.pop %v2450
    %v2491 = vrcp.pop %v2459
    %v2492 = vrcp.pop %v2468
    %v2493 = vrcp.pop %v2477
    %v2494 = vmul.f32 %v2271, %v2478
    %v2495 = vmul.f32 %v2273, %v2478
    %v2496 = vmul.f32 %v2275, %v2479
    %v2497 = vmul.f32 %v2277, %v2479
    %v2498 = vmul.f32 %v2279, %v2480
    %v2499 = vmul.f32 %v2281, %v2480
    %v2500 = vmul.f32 %v2283, %v2481
    %v2501 = vmul.f32 %v2285, %v2481
    %v2502 = vmul.f32 %v2287, %v2482
    %v2503 = vmul.f32 %v2289, %v2482
    %v2504 = vmul.f32 %v2291, %v2483
    %v2505 = vmul.f32 %v2293, %v2483
    %v2506 = vmul.f32 %v2295, %v2484
    %v2507 = vmul.f32 %v2297, %v2484
    %v2508 = vmul.f32 %v2299, %v2485
    %v2509 = vmul.f32 %v2301, %v2485
    %v2510 = vmul.f32 %v2303, %v2486
    %v2511 = vmul.f32 %v2305, %v2486
    %v2512 = vmul.f32 %v2307, %v2487
    %v2513 = vmul.f32 %v2309, %v2487
    %v2514 = vmul.f32 %v2311, %v2488
    %v2515 = vmul.f32 %v2313, %v2488
    %v2516 = vmul.f32 %v2315, %v2489
    %v2517 = vmul.f32 %v2317, %v2489
    %v2518 = vmul.f32 %v2319, %v2490
    %v2519 = vmul.f32 %v2321, %v2490
    %v2520 = vmul.f32 %v2323, %v2491
    %v2521 = vmul.f32 %v2325, %v2491
    %v2522 = vmul.f32 %v2327, %v2492
    %v2523 = vmul.f32 %v2329, %v2492
    %v2524 = vmul.f32 %v2331, %v2493
    %v2525 = vmul.f32 %v2333, %v2493
    %2527 = vset.pattern.permute.xlu0 0
    %2528 = vperm.xlu0 %2527, %v2494
    %v2529 = vpop.permute.xlu0 %2528
    %2532 = vset.pattern.permute.xlu0 0
    %2533 = vperm.xlu0 %2532, %v2495
    %v2534 = vpop.permute.xlu0 %2533
    %2537 = vset.pattern.permute.xlu0 0
    %2538 = vperm.xlu0 %2537, %v2496
    %v2539 = vpop.permute.xlu0 %2538
    %2542 = vset.pattern.permute.xlu0 0
    %2543 = vperm.xlu0 %2542, %v2497
    %v2544 = vpop.permute.xlu0 %2543
    %2547 = vset.pattern.permute.xlu0 0
    %2548 = vperm.xlu0 %2547, %v2498
    %v2549 = vpop.permute.xlu0 %2548
    %2552 = vset.pattern.permute.xlu0 0
    %2553 = vperm.xlu0 %2552, %v2499
    %v2554 = vpop.permute.xlu0 %2553
    %2557 = vset.pattern.permute.xlu0 0
    %2558 = vperm.xlu0 %2557, %v2500
    %v2559 = vpop.permute.xlu0 %2558
    %2562 = vset.pattern.permute.xlu0 0
    %2563 = vperm.xlu0 %2562, %v2501
    %v2564 = vpop.permute.xlu0 %2563
    %2567 = vset.pattern.permute.xlu0 0
    %2568 = vperm.xlu0 %2567, %v2502
    %v2569 = vpop.permute.xlu0 %2568
    %2572 = vset.pattern.permute.xlu0 0
    %2573 = vperm.xlu0 %2572, %v2503
    %v2574 = vpop.permute.xlu0 %2573
    %2577 = vset.pattern.permute.xlu0 0
    %2578 = vperm.xlu0 %2577, %v2504
    %v2579 = vpop.permute.xlu0 %2578
    %2582 = vset.pattern.permute.xlu0 0
    %2583 = vperm.xlu0 %2582, %v2505
    %v2584 = vpop.permute.xlu0 %2583
    %2587 = vset.pattern.permute.xlu0 0
    %2588 = vperm.xlu0 %2587, %v2506
    %v2589 = vpop.permute.xlu0 %2588
    %2592 = vset.pattern.permute.xlu0 0
    %2593 = vperm.xlu0 %2592, %v2507
    %v2594 = vpop.permute.xlu0 %2593
    %2597 = vset.pattern.permute.xlu0 0
    %2598 = vperm.xlu0 %2597, %v2508
    %v2599 = vpop.permute.xlu0 %2598
    %2602 = vset.pattern.permute.xlu0 0
    %2603 = vperm.xlu0 %2602, %v2509
    %v2604 = vpop.permute.xlu0 %2603
    %2607 = vset.pattern.permute.xlu0 0
    %2608 = vperm.xlu0 %2607, %v2510
    %v2609 = vpop.permute.xlu0 %2608
    %2612 = vset.pattern.permute.xlu0 0
    %2613 = vperm.xlu0 %2612, %v2511
    %v2614 = vpop.permute.xlu0 %2613
    %2617 = vset.pattern.permute.xlu0 0
    %2618 = vperm.xlu0 %2617, %v2512
    %v2619 = vpop.permute.xlu0 %2618
    %2622 = vset.pattern.permute.xlu0 0
    %2623 = vperm.xlu0 %2622, %v2513
    %v2624 = vpop.permute.xlu0 %2623
    %2627 = vset.pattern.permute.xlu0 0
    %2628 = vperm.xlu0 %2627, %v2514
    %v2629 = vpop.permute.xlu0 %2628
    %2632 = vset.pattern.permute.xlu0 0
    %2633 = vperm.xlu0 %2632, %v2515
    %v2634 = vpop.permute.xlu0 %2633
    %2637 = vset.pattern.permute.xlu0 0
    %2638 = vperm.xlu0 %2637, %v2516
    %v2639 = vpop.permute.xlu0 %2638
    %2642 = vset.pattern.permute.xlu0 0
    %2643 = vperm.xlu0 %2642, %v2517
    %v2644 = vpop.permute.xlu0 %2643
    %2647 = vset.pattern.permute.xlu0 0
    %2648 = vperm.xlu0 %2647, %v2518
    %v2649 = vpop.permute.xlu0 %2648
    %2652 = vset.pattern.permute.xlu0 0
    %2653 = vperm.xlu0 %2652, %v2519
    %v2654 = vpop.permute.xlu0 %2653
    %2657 = vset.pattern.permute.xlu0 0
    %2658 = vperm.xlu0 %2657, %v2520
    %v2659 = vpop.permute.xlu0 %2658
    %2662 = vset.pattern.permute.xlu0 0
    %2663 = vperm.xlu0 %2662, %v2521
    %v2664 = vpop.permute.xlu0 %2663
    %2667 = vset.pattern.permute.xlu0 0
    %2668 = vperm.xlu0 %2667, %v2522
    %v2669 = vpop.permute.xlu0 %2668
    %2672 = vset.pattern.permute.xlu0 0
    %2673 = vperm.xlu0 %2672, %v2523
    %v2674 = vpop.permute.xlu0 %2673
    %2677 = vset.pattern.permute.xlu0 0
    %2678 = vperm.xlu0 %2677, %v2524
    %v2679 = vpop.permute.xlu0 %2678
    %2682 = vset.pattern.permute.xlu0 0
    %2683 = vperm.xlu0 %2682, %v2525
    %v2684 = vpop.permute.xlu0 %2683
    %v2686 = vmul.f32 %v2529, %v717
    %v2687 = vmul.f32 %v2534, %v722
    %v2688 = vmul.f32 %v2539, %v730
    %v2689 = vmul.f32 %v2544, %v733
    %v2690 = vmul.f32 %v2549, %v741
    %v2691 = vmul.f32 %v2554, %v746
    %v2692 = vmul.f32 %v2559, %v754
    %v2693 = vmul.f32 %v2564, %v757
    %v2694 = vmul.f32 %v2569, %v765
    %v2695 = vmul.f32 %v2574, %v770
    %v2696 = vmul.f32 %v2579, %v778
    %v2697 = vmul.f32 %v2584, %v781
    %v2698 = vmul.f32 %v2589, %v789
    %v2699 = vmul.f32 %v2594, %v794
    %v2700 = vmul.f32 %v2599, %v802
    %v2701 = vmul.f32 %v2604, %v805
    %v2702 = vmul.f32 %v2609, %v813
    %v2703 = vmul.f32 %v2614, %v818
    %v2704 = vmul.f32 %v2619, %v826
    %v2705 = vmul.f32 %v2624, %v829
    %v2706 = vmul.f32 %v2629, %v837
    %v2707 = vmul.f32 %v2634, %v842
    %v2708 = vmul.f32 %v2639, %v850
    %v2709 = vmul.f32 %v2644, %v853
    %v2710 = vmul.f32 %v2649, %v861
    %v2711 = vmul.f32 %v2654, %v866
    %v2712 = vmul.f32 %v2659, %v874
    %v2713 = vmul.f32 %v2664, %v877
    %v2714 = vmul.f32 %v2669, %v885
    %v2715 = vmul.f32 %v2674, %v890
    %v2716 = vmul.f32 %v2679, %v898
    %v2717 = vmul.f32 %v2684, %v901
    %v2718 = vsel %vm1752, %v2686, 0.0
    %v2719 = vsel %vm1752, %v2687, 0.0
    %v2720 = vadd.f32 %v2718, %v2719
    %v2721 = vrot.slane %v2720, 4
    %v2722 = vadd.f32 %v2720, %v2721
    %v2723 = vrot.slane %v2722, 2
    %v2724 = vadd.f32 %v2722, %v2723
    %v2725 = vrot.slane %v2724, 1
    %v2726 = vadd.f32 %v2724, %v2725
    %v2727 = vsel %vm1752, %v2688, 0.0
    %v2728 = vsel %vm1752, %v2689, 0.0
    %v2729 = vadd.f32 %v2727, %v2728
    %v2730 = vrot.slane %v2729, 4
    %v2731 = vadd.f32 %v2729, %v2730
    %v2732 = vrot.slane %v2731, 2
    %v2733 = vadd.f32 %v2731, %v2732
    %v2734 = vrot.slane %v2733, 1
    %v2735 = vadd.f32 %v2733, %v2734
    %v2736 = vsel %vm1752, %v2690, 0.0
    %v2737 = vsel %vm1752, %v2691, 0.0
    %v2738 = vadd.f32 %v2736, %v2737
    %v2739 = vrot.slane %v2738, 4
    %v2740 = vadd.f32 %v2738, %v2739
    %v2741 = vrot.slane %v2740, 2
    %v2742 = vadd.f32 %v2740, %v2741
    %v2743 = vrot.slane %v2742, 1
    %v2744 = vadd.f32 %v2742, %v2743
    %v2745 = vsel %vm1752, %v2692, 0.0
    %v2746 = vsel %vm1752, %v2693, 0.0
    %v2747 = vadd.f32 %v2745, %v2746
    %v2748 = vrot.slane %v2747, 4
    %v2749 = vadd.f32 %v2747, %v2748
    %v2750 = vrot.slane %v2749, 2
    %v2751 = vadd.f32 %v2749, %v2750
    %v2752 = vrot.slane %v2751, 1
    %v2753 = vadd.f32 %v2751, %v2752
    %v2754 = vsel %vm1752, %v2694, 0.0
    %v2755 = vsel %vm1752, %v2695, 0.0
    %v2756 = vadd.f32 %v2754, %v2755
    %v2757 = vrot.slane %v2756, 4
    %v2758 = vadd.f32 %v2756, %v2757
    %v2759 = vrot.slane %v2758, 2
    %v2760 = vadd.f32 %v2758, %v2759
    %v2761 = vrot.slane %v2760, 1
    %v2762 = vadd.f32 %v2760, %v2761
    %v2763 = vsel %vm1752, %v2696, 0.0
    %v2764 = vsel %vm1752, %v2697, 0.0
    %v2765 = vadd.f32 %v2763, %v2764
    %v2766 = vrot.slane %v2765, 4
    %v2767 = vadd.f32 %v2765, %v2766
    %v2768 = vrot.slane %v2767, 2
    %v2769 = vadd.f32 %v2767, %v2768
    %v2770 = vrot.slane %v2769, 1
    %v2771 = vadd.f32 %v2769, %v2770
    %v2772 = vsel %vm1752, %v2698, 0.0
    %v2773 = vsel %vm1752, %v2699, 0.0
    %v2774 = vadd.f32 %v2772, %v2773
    %v2775 = vrot.slane %v2774, 4
    %v2776 = vadd.f32 %v2774, %v2775
    %v2777 = vrot.slane %v2776, 2
    %v2778 = vadd.f32 %v2776, %v2777
    %v2779 = vrot.slane %v2778, 1
    %v2780 = vadd.f32 %v2778, %v2779
    %v2781 = vsel %vm1752, %v2700, 0.0
    %v2782 = vsel %vm1752, %v2701, 0.0
    %v2783 = vadd.f32 %v2781, %v2782
    %v2784 = vrot.slane %v2783, 4
    %v2785 = vadd.f32 %v2783, %v2784
    %v2786 = vrot.slane %v2785, 2
    %v2787 = vadd.f32 %v2785, %v2786
    %v2788 = vrot.slane %v2787, 1
    %v2789 = vadd.f32 %v2787, %v2788
    %v2790 = vsel %vm1752, %v2702, 0.0
    %v2791 = vsel %vm1752, %v2703, 0.0
    %v2792 = vadd.f32 %v2790, %v2791
    %v2793 = vrot.slane %v2792, 4
    %v2794 = vadd.f32 %v2792, %v2793
    %v2795 = vrot.slane %v2794, 2
    %v2796 = vadd.f32 %v2794, %v2795
    %v2797 = vrot.slane %v2796, 1
    %v2798 = vadd.f32 %v2796, %v2797
    %v2799 = vsel %vm1752, %v2704, 0.0
    %v2800 = vsel %vm1752, %v2705, 0.0
    %v2801 = vadd.f32 %v2799, %v2800
    %v2802 = vrot.slane %v2801, 4
    %v2803 = vadd.f32 %v2801, %v2802
    %v2804 = vrot.slane %v2803, 2
    %v2805 = vadd.f32 %v2803, %v2804
    %v2806 = vrot.slane %v2805, 1
    %v2807 = vadd.f32 %v2805, %v2806
    %v2808 = vsel %vm1752, %v2706, 0.0
    %v2809 = vsel %vm1752, %v2707, 0.0
    %v2810 = vadd.f32 %v2808, %v2809
    %v2811 = vrot.slane %v2810, 4
    %v2812 = vadd.f32 %v2810, %v2811
    %v2813 = vrot.slane %v2812, 2
    %v2814 = vadd.f32 %v2812, %v2813
    %v2815 = vrot.slane %v2814, 1
    %v2816 = vadd.f32 %v2814, %v2815
    %v2817 = vsel %vm1752, %v2708, 0.0
    %v2818 = vsel %vm1752, %v2709, 0.0
    %v2819 = vadd.f32 %v2817, %v2818
    %v2820 = vrot.slane %v2819, 4
    %v2821 = vadd.f32 %v2819, %v2820
    %v2822 = vrot.slane %v2821, 2
    %v2823 = vadd.f32 %v2821, %v2822
    %v2824 = vrot.slane %v2823, 1
    %v2825 = vadd.f32 %v2823, %v2824
    %v2826 = vsel %vm1752, %v2710, 0.0
    %v2827 = vsel %vm1752, %v2711, 0.0
    %v2828 = vadd.f32 %v2826, %v2827
    %v2829 = vrot.slane %v2828, 4
    %v2830 = vadd.f32 %v2828, %v2829
    %v2831 = vrot.slane %v2830, 2
    %v2832 = vadd.f32 %v2830, %v2831
    %v2833 = vrot.slane %v2832, 1
    %v2834 = vadd.f32 %v2832, %v2833
    %v2835 = vsel %vm1752, %v2712, 0.0
    %v2836 = vsel %vm1752, %v2713, 0.0
    %v2837 = vadd.f32 %v2835, %v2836
    %v2838 = vrot.slane %v2837, 4
    %v2839 = vadd.f32 %v2837, %v2838
    %v2840 = vrot.slane %v2839, 2
    %v2841 = vadd.f32 %v2839, %v2840
    %v2842 = vrot.slane %v2841, 1
    %v2843 = vadd.f32 %v2841, %v2842
    %v2844 = vsel %vm1752, %v2714, 0.0
    %v2845 = vsel %vm1752, %v2715, 0.0
    %v2846 = vadd.f32 %v2844, %v2845
    %v2847 = vrot.slane %v2846, 4
    %v2848 = vadd.f32 %v2846, %v2847
    %v2849 = vrot.slane %v2848, 2
    %v2850 = vadd.f32 %v2848, %v2849
    %v2851 = vrot.slane %v2850, 1
    %v2852 = vadd.f32 %v2850, %v2851
    %v2853 = vsel %vm1752, %v2716, 0.0
    %v2854 = vsel %vm1752, %v2717, 0.0
    %v2855 = vadd.f32 %v2853, %v2854
    %v2856 = vrot.slane %v2855, 4
    %v2857 = vadd.f32 %v2855, %v2856
    %v2858 = vrot.slane %v2857, 2
    %v2859 = vadd.f32 %v2857, %v2858
    %v2860 = vrot.slane %v2859, 1
    %v2861 = vadd.f32 %v2859, %v2860
    %vm2878 = vcmask 1041409
    %v2879 = vsel %vm2878, %v1766, %v1759
    %vm2880 = vcmask 1042434
    %v2881 = vsel %vm2880, %v1773, %v2879
    %vm2882 = vcmask 1043459
    %v2883 = vsel %vm2882, %v1780, %v2881
    %vm2884 = vcmask 1044484
    %v2885 = vsel %vm2884, %v1787, %v2883
    %vm2886 = vcmask 1045509
    %v2887 = vsel %vm2886, %v1794, %v2885
    %vm2888 = vcmask 1046534
    %v2889 = vsel %vm2888, %v1801, %v2887
    %vm2890 = vcmask 1047559
    %v2891 = vsel %vm2890, %v1808, %v2889
    %v2892 = vsel %vm2878, %v1822, %v1815
    %v2893 = vsel %vm2880, %v1829, %v2892
    %v2894 = vsel %vm2882, %v1836, %v2893
    %v2895 = vsel %vm2884, %v1843, %v2894
    %v2896 = vsel %vm2886, %v1850, %v2895
    %v2897 = vsel %vm2888, %v1857, %v2896
    %v2898 = vsel %vm2890, %v1864, %v2897
    %v2917 = vsel %vm2878, %v2735, %v2726
    %v2918 = vsel %vm2880, %v2744, %v2917
    %v2919 = vsel %vm2882, %v2753, %v2918
    %v2920 = vsel %vm2884, %v2762, %v2919
    %v2921 = vsel %vm2886, %v2771, %v2920
    %v2922 = vsel %vm2888, %v2780, %v2921
    %v2923 = vsel %vm2890, %v2789, %v2922
    %v2924 = vsel %vm2878, %v2807, %v2798
    %v2925 = vsel %vm2880, %v2816, %v2924
    %v2926 = vsel %vm2882, %v2825, %v2925
    %v2927 = vsel %vm2884, %v2834, %v2926
    %v2928 = vsel %vm2886, %v2843, %v2927
    %v2929 = vsel %vm2888, %v2852, %v2928
    %v2930 = vsel %vm2890, %v2861, %v2929
    %2931 = vrot.lane.b32.xlu0 %v2923, 32
    %v2932 = vpop.permute.xlu0 %2931
    %2933 = vrot.lane.b32.xlu0 %v2930, 32
    %v2934 = vpop.permute.xlu0 %2933
    %v2937 = vsel %vm1752, %v2891, %v2932
    %v2938 = vsel %vm1752, %v2898, %v2934
    %v2939 = vld [vmem:[%s5] sm:$0xf]
    %v2940 = vld [vmem:[%s5 + $0x4] sm:$0xf]
    %v2941 = vld [vmem:[%s5 + $0x8] sm:$0xf]
    %v2942 = vld [vmem:[%s5 + $0xc] sm:$0xf]
    %v2943 = vld [vmem:[%s5 + $0x10] sm:$0xf]
    %v2944 = vld [vmem:[%s5 + $0x14] sm:$0xf]
    %v2945 = vld [vmem:[%s5 + $0x18] sm:$0xf]
    %v2946 = vld [vmem:[%s5 + $0x1c] sm:$0xf]
    %v2947 = vld [vmem:[%s6] sm:$0x1]
    %v2948 = vpack.c.bf16 %v2938, %v2937
    %v2950 = vlaneseq
    %v2951 = vshrl.u32 %v2950, 7
    %v2952 = vsub.s32 0, %v2951
    %v2953 = vrot.slane %v2947, %v2952
    %v2963 = vunpack.c.l.b16 %v2939
    %v2964 = vunpack.c.l.b16 %v2940
    %v2965 = vunpack.c.l.b16 %v2941
    %v2966 = vunpack.c.l.b16 %v2942
    %v2967 = vunpack.c.l.b16 %v2943
    %v2968 = vunpack.c.l.b16 %v2944
    %v2969 = vunpack.c.l.b16 %v2945
    %v2970 = vunpack.c.l.b16 %v2946
    %v2971 = vpack.c.b16 %v2964, %v2963
    %v2972 = vpack.c.b16 %v2966, %v2965
    %v2973 = vpack.c.b16 %v2968, %v2967
    %v2974 = vpack.c.b16 %v2970, %v2969
    %v2980 = vsel %vm606, %v2948, 0
    %2982 = vmatprep.subr.bf16.mxu0 0
    %2983 = vmatpush1.bf16.msra.mxu0 %v2971
    %2984 = vmatprep.subr.bf16.mxu0 0
    %2985 = vmatpush1.bf16.msra.mxu0 %v2972
    %2986 = vmatprep.subr.bf16.mxu0 0
    %2987 = vmatpush1.bf16.msra.mxu0 %v2973
    %2988 = vmatprep.subr.bf16.mxu0 0
    %2989 = vmatpush1.bf16.msra.mxu0 %v2974
    %2990 = vmatprep.subr.bf16.mxu0 0
    %2991 = vmatpush1.bf16.msra.mxu0 0
    %2992 = vmatprep.subr.bf16.mxu0 0
    %2993 = vmatpush1.bf16.msra.mxu0 0
    %2994 = vmatprep.subr.bf16.mxu0 0
    %2995 = vmatpush1.bf16.msra.mxu0 0
    %2996 = vmatprep.subr.bf16.mxu0 0
    %2997 = vmatpush1.bf16.msra.mxu0 0
    %2998 = vmatprep.subr.bf16.mxu0 0
    %2999 = vmatpush1.bf16.msra.mxu0 0
    %3000 = vmatprep.subr.bf16.mxu0 0
    %3001 = vmatpush1.bf16.msra.mxu0 0
    %3002 = vmatprep.subr.bf16.mxu0 0
    %3003 = vmatpush1.bf16.msra.mxu0 0
    %3004 = vmatprep.subr.bf16.mxu0 0
    %3005 = vmatpush1.bf16.msra.mxu0 0
    %3006 = vmatprep.subr.bf16.mxu0 0
    %3007 = vmatpush1.bf16.msra.mxu0 0
    %3008 = vmatprep.subr.bf16.mxu0 0
    %3009 = vmatpush1.bf16.msra.mxu0 0
    %3010 = vmatprep.subr.bf16.mxu0 0
    %3011 = vmatpush1.bf16.msra.mxu0 0
    %3012 = vmatprep.subr.bf16.mxu0 0
    %3013 = vmatpush1.bf16.msra.mxu0 0
    %3014 = vmatprep.mubr.bf16.mxu0 0
    %3015 = vmatmul.mubr.bf16.gmra.mrb[0].mxu0 %v2980
    %v3016 = vpop.f32.mrb[0].mxu0
    %v3017 = vadd.f32 %v2953, %v3016
    %v3018 = vpop.f32.mrb[0].mxu0
    %v3019 = vpop.f32.mrb[0].mxu0
    %v3020 = vadd.f32 %v2953, %v3019
    %v3021 = vpop.f32.mrb[0].mxu0
    %3022 = vdwg.mxu0
    %v3023 = vmax.f32 %v3017, 0.0
    %v3024 = vmax.f32 %v3020, 0.0
    %v3025 = vld [vmem:[%s7] sm:$0xf]
    %v3026 = vld [vmem:[%s7 + $0x4] sm:$0xf]
    %v3027 = vld [vmem:[%s7 + $0x8] sm:$0xf]
    %v3028 = vld [vmem:[%s7 + $0xc] sm:$0xf]
    %v3029 = vld [vmem:[%s8] sm:$0x1]
    %v3030 = vpack.c.bf16 %v3024, %v3023
    %v3032 = vlaneseq
    %v3033 = vshrl.u32 %v3032, 7
    %v3034 = vsub.s32 0, %v3033
    %v3035 = vrot.slane %v3029, %v3034
    %v3041 = vunpack.c.l.b16 %v3025
    %v3042 = vunpack.c.l.b16 %v3026
    %v3043 = vunpack.c.l.b16 %v3027
    %v3044 = vunpack.c.l.b16 %v3028
    %v3045 = vpack.c.b16 %v3042, %v3041
    %v3046 = vpack.c.b16 %v3044, %v3043
    %v3050 = vsel %vm1752, %v3030, 0
    %3052 = vmatprep.subr.bf16.mxu0 0
    %3053 = vmatpush1.bf16.msra.mxu0 %v3045
    %3054 = vmatprep.subr.bf16.mxu0 0
    %3055 = vmatpush1.bf16.msra.mxu0 %v3046
    %3056 = vmatprep.subr.bf16.mxu0 0
    %3057 = vmatpush1.bf16.msra.mxu0 0
    %3058 = vmatprep.subr.bf16.mxu0 0
    %3059 = vmatpush1.bf16.msra.mxu0 0
    %3060 = vmatprep.subr.bf16.mxu0 0
    %3061 = vmatpush1.bf16.msra.mxu0 0
    %3062 = vmatprep.subr.bf16.mxu0 0
    %3063 = vmatpush1.bf16.msra.mxu0 0
    %3064 = vmatprep.subr.bf16.mxu0 0
    %3065 = vmatpush1.bf16.msra.mxu0 0
    %3066 = vmatprep.subr.bf16.mxu0 0
    %3067 = vmatpush1.bf16.msra.mxu0 0
    %3068 = vmatprep.subr.bf16.mxu0 0
    %3069 = vmatpush1.bf16.msra.mxu0 0
    %3070 = vmatprep.subr.bf16.mxu0 0
    %3071 = vmatpush1.bf16.msra.mxu0 0
    %3072 = vmatprep.subr.bf16.mxu0 0
    %3073 = vmatpush1.bf16.msra.mxu0 0
    %3074 = vmatprep.subr.bf16.mxu0 0
    %3075 = vmatpush1.bf16.msra.mxu0 0
    %3076 = vmatprep.subr.bf16.mxu0 0
    %3077 = vmatpush1.bf16.msra.mxu0 0
    %3078 = vmatprep.subr.bf16.mxu0 0
    %3079 = vmatpush1.bf16.msra.mxu0 0
    %3080 = vmatprep.subr.bf16.mxu0 0
    %3081 = vmatpush1.bf16.msra.mxu0 0
    %3082 = vmatprep.subr.bf16.mxu0 0
    %3083 = vmatpush1.bf16.msra.mxu0 0
    %3084 = vmatprep.mubr.bf16.mxu0 0
    %3085 = vmatmul.mubr.bf16.gmra.mrb[0].mxu0 %v3050
    %v3086 = vpop.f32.mrb[0].mxu0
    %v3087 = vadd.f32 %v3035, %v3086
    %v3088 = vpop.f32.mrb[0].mxu0
    %v3089 = vpop.f32.mrb[0].mxu0
    %v3090 = vadd.f32 %v3035, %v3089
    %v3091 = vpop.f32.mrb[0].mxu0
    %3092 = vdwg.mxu0
    %v3093 = vmax.f32 %v3087, 0.0
    %v3094 = vmax.f32 %v3090, 0.0
    %v3095 = vld [vmem:[%s9] sm:$0x1]
    %v3096 = vld [vmem:[#allocation2] sm:$0x1]
    %v3097 = vpack.c.bf16 %v3094, %v3093
    %3099 = vset.pattern.permute.xlu0 0
    %3100 = vperm.xlu0 %3099, %v3096
    %v3101 = vpop.permute.xlu0 %3100
    %v3103 = vlaneseq
    %v3104 = vshrl.u32 %v3103, 7
    %v3105 = vsub.s32 0, %v3104
    %v3106 = vrot.slane %v3101, %v3105
    %vm3107 = vcmask 130048
    %v3109 = vsel %vm3107, %v3095, 0
    %v3112 = vsel %vm3107, %v3097, 0
    %3114 = vmatprep.subr.bf16.mxu0 0
    %3115 = vmatpush1.bf16.xpose.msra.mxu0 %v3112
    %3116 = vmatprep.subr.bf16.mxu0 0
    %3117 = vmatpush1.bf16.xpose.msra.mxu0 0
    %3118 = vmatprep.subr.bf16.mxu0 0
    %3119 = vmatpush1.bf16.xpose.msra.mxu0 0
    %3120 = vmatprep.subr.bf16.mxu0 0
    %3121 = vmatpush1.bf16.xpose.msra.mxu0 0
    %3122 = vmatprep.subr.bf16.mxu0 0
    %3123 = vmatpush1.bf16.xpose.msra.mxu0 0
    %3124 = vmatprep.subr.bf16.mxu0 0
    %3125 = vmatpush1.bf16.xpose.msra.mxu0 0
    %3126 = vmatprep.subr.bf16.mxu0 0
    %3127 = vmatpush1.bf16.xpose.msra.mxu0 0
    %3128 = vmatprep.subr.bf16.mxu0 0
    %3129 = vmatpush1.bf16.xpose.msra.mxu0 0
    %3130 = vmatprep.subr.bf16.mxu0 0
    %3131 = vmatpush1.bf16.xpose.msra.mxu0 0
    %3132 = vmatprep.subr.bf16.mxu0 0
    %3133 = vmatpush1.bf16.xpose.msra.mxu0 0
    %3134 = vmatprep.subr.bf16.mxu0 0
    %3135 = vmatpush1.bf16.xpose.msra.mxu0 0
    %3136 = vmatprep.subr.bf16.mxu0 0
    %3137 = vmatpush1.bf16.xpose.msra.mxu0 0
    %3138 = vmatprep.subr.bf16.mxu0 0
    %3139 = vmatpush1.bf16.xpose.msra.mxu0 0
    %3140 = vmatprep.subr.bf16.mxu0 0
    %3141 = vmatpush1.bf16.xpose.msra.mxu0 0
    %3142 = vmatprep.subr.bf16.mxu0 0
    %3143 = vmatpush1.bf16.xpose.msra.mxu0 0
    %3144 = vmatprep.subr.bf16.mxu0 0
    %3145 = vmatpush1.bf16.xpose.msra.mxu0 0
    %3146 = vmatprep.mubr.bf16.mxu0 0
    %3147 = vmatmul.mubr.bf16.gmra.mrb[0].mxu0 %v3109
    %v3148 = vpop.f32.mrb[0].mxu0
    %v3149 = vadd.f32 %v3106, %v3148
    %v3150 = vpop.f32.mrb[0].mxu0
    %v3151 = vpop.f32.mrb[0].mxu0
    %v3152 = vpop.f32.mrb[0].mxu0
    %3153 = vdwg.mxu0
    %vm3154 = vcmask 122880
    %3155 = vst.msk [vmem:[#allocation3] sm:$0x1] %vm3154, %v3149
    // Predicated region
    $region46: #{tpu_custom_call.1} parent=1 // pred_check
      _
    $region47: #{tpu_custom_call.1} parent=1 // pred_check_branch
      %3157 = sbr.rel (0) target = $region49
    $region48: #{tpu_custom_call.1} parent=1 // pred_region
      %s3159 = ssub.s32 16, 16
      %3160 = vsyncadd [#allocation4], %s3159
      %s3162 = sshll.u32 [#allocation3], 4
      %s3163 = int_to_ptr.vmem [resolvable:$true] %s3162
      %3165 = dma.vmem_to_hbm [thread:$0]  %s3163, 16, %s11, [#allocation4]
    $region49: #{tpu_custom_call.1} parent=1 // pred_fallthru
      _
    // Predicated region
    $region50: #{tpu_custom_call.1} parent=1 // pred_check
      _
    $region51: #{tpu_custom_call.1} parent=1 // pred_check_branch
      %3167 = sbr.rel (0) target = $region53
    $region52: #{tpu_custom_call.1} parent=1 // pred_region
      %3168 = dma.done [#allocation4], 16
    $region53: #{tpu_custom_call.1} parent=1 // pred_fallthru
      _
    %3169 = vsyncpa [#allocation4], 1

</llo_original>
